<compile_context>
chip_gen: v7x
topology: tpu7x:2x2x1
jax: 0.10.0
libtpu: 0.0.40
codegen_flags: <defaults>
</compile_context>

<pallas_src>
import functools

import jax
import jax.numpy as jnp
from jax.experimental import pallas as pl
from jax.experimental.pallas import tpu as pltpu

LN_EPS = 1e-5  # PyTorch nn.LayerNorm default eps


def _round_up(n, m):
    return ((n + m - 1) // m) * m


def _cdiv(a, b):
    return -(-a // b)


# --------------------------------------------------------------------------- #
# Kernels
# --------------------------------------------------------------------------- #
def _layernorm_rows(x, gamma, beta, h_real, pad_lanes):
    """LayerNorm over the last (lane) dim of a zero-padded (tm, Hp) f32 slab.

    Two-pass variance (mean, then centered sum of squares) with an exact
    correction for the zero-padded lanes (each contributes mean^2).
    """
    inv_h = 1.0 / h_real
    mean = jnp.sum(x, axis=-1, keepdims=True) * inv_h
    xc = x - mean
    ssq = jnp.sum(xc * xc, axis=-1, keepdims=True) - pad_lanes * (mean * mean)
    var = jnp.maximum(ssq * inv_h, 0.0)
    xn = xc * jax.lax.rsqrt(var + LN_EPS)
    # gamma/beta are zero on padded lanes -> padded lanes of the result stay 0.
    return xn * gamma + beta


def encoder_kernel_resident(x_ref, gamma_ref, beta_ref, w1_ref, b1_ref,
                            w2_ref, b2_ref, o_ref, *, h_real, pad_lanes):
    """Both HxH (padded) weights resident in VMEM; grid = (row_tiles,)."""
    xn = _layernorm_rows(x_ref[...].astype(jnp.float32), gamma_ref[...],
                         beta_ref[...], h_real, pad_lanes)
    # fc1 + ReLU: bf16 MXU operands, f32 accumulation; bias/ReLU stay in f32.
    h = jnp.dot(xn.astype(jnp.bfloat16), w1_ref[...],
                preferred_element_type=jnp.float32)
    h = jnp.maximum(h + b1_ref[...], 0.0)
    # dropout1: eval-mode identity.
    out = jnp.dot(h.astype(jnp.bfloat16), w2_ref[...],
                  preferred_element_type=jnp.float32)
    # dropout2: eval-mode identity.
    o_ref[...] = (out + b2_ref[...]).astype(o_ref.dtype)
    # TODO(synk): training-mode dropout would use pltpu.prng_seed + prng_random_bits.


def encoder_kernel_tiled(x_ref, gamma_ref, beta_ref, w1_ref, b1_ref,
                         w2_ref, b2_ref, o_ref, xn_ref, acc_ref, *,
                         h_real, pad_lanes):
    """Weight-streaming variant; grid = (row_tiles, F_tiles), F last/'arbitrary'.

    At f == 0 the row tile is LayerNorm'ed once into a bf16 scratch; each f
    step computes a (tm, tf) slice of relu(fc1) and accumulates its fc2
    partial product into a (tm, Hp) f32 accumulator.
    """
    f = pl.program_id(1)

    @pl.when(f == 0)
    def _():
        xn = _layernorm_rows(x_ref[...].astype(jnp.float32), gamma_ref[...],
                             beta_ref[...], h_real, pad_lanes)
        xn_ref[...] = xn.astype(jnp.bfloat16)
        acc_ref[...] = jnp.zeros_like(acc_ref)

    h = jnp.dot(xn_ref[...], w1_ref[...], preferred_element_type=jnp.float32)
    h = jnp.maximum(h + b1_ref[...], 0.0)          # dropout1: identity (eval)
    acc_ref[...] += jnp.dot(h.astype(jnp.bfloat16), w2_ref[...],
                            preferred_element_type=jnp.float32)

    @pl.when(f == pl.num_programs(1) - 1)
    def _():
        # dropout2: identity (eval).
        o_ref[...] = (acc_ref[...] + b2_ref[...]).astype(o_ref.dtype)


# --------------------------------------------------------------------------- #
# VMEM / tiling heuristics
# --------------------------------------------------------------------------- #
def _vmem_capacity_bytes():
    try:
        cap = pltpu.get_tpu_info().vmem_capacity_bytes
        if cap:
            return int(cap)
    except Exception:
        pass
    return 64 * 1024 * 1024  # conservative fallback (v7x per-TC capacity)


def _vmem_limit_bytes():
    # Raise the scoped-VMEM limit with ~15% headroom below physical capacity.
    return int(_vmem_capacity_bytes() * 0.85)


def _resident_weights_fit(hp, tm):
    """Can both HxH bf16 weights stay resident (single-buffered) in VMEM?"""
    weights = 2 * hp * hp * 2                # two bf16 weights, single-buffered
    act = 2 * (2 * tm * hp * 4)              # x-in + out, double-buffered
    temps = 6 * tm * hp * 4                  # live f32 temporaries in the body
    vecs = 8 * hp * 4
    return weights + act + temps + vecs <= int(_vmem_capacity_bytes() * 0.7)


def _choose_tm(tm, n_rows, hp):
    if tm is None:
        # HBM-bound regime (H <= ~1536): bigger row tiles amortize the
        # ~0.35 us/grid-step overhead; above that, cap tm so the live f32
        # temporaries (x, xn, h, out ...) stay bounded.
        tm = 512 if hp <= 1536 else 256
    tm = max(8, min(tm, _round_up(n_rows, 8)))
    # Prefer >= 2 row tiles so both v7x TensorCores get work ("parallel" axis).
    if n_rows > 8 and _cdiv(n_rows, tm) < 2:
        tm = max(8, _round_up(_cdiv(n_rows, 2), 8))
    return tm


def _choose_tf(tf, hp):
    if tf is not None:
        assert hp % tf == 0 and tf % 128 == 0, "tf must divide Hp, multiple of 128"
        return tf
    for cand in (512, 384, 256, 128):
        if hp % cand == 0:
            return cand
    return 128


# --------------------------------------------------------------------------- #
# pallas_call builder + forward wrapper
# --------------------------------------------------------------------------- #
def _encoder_pallas_call(x2, prep, *, tm, tf, use_tiled, out_dtype,
                         single_buffer_consts):
    Np, Hp = x2.shape
    H = prep["H"]
    n_row = Np // tm

    def const_spec(shape, index_map):
        # Constant-index blocks: single-buffer them (default double-buffering
        # allocates a second, never-used ping-pong copy -> 2x VMEM for weights).
        if single_buffer_consts:
            return pl.BlockSpec(shape, index_map, pipeline_mode=pl.Buffered(1))
        return pl.BlockSpec(shape, index_map)

    operands = (x2, prep["gamma"], prep["beta"], prep["w1_t"], prep["b1"],
                prep["w2_t"], prep["b2"])

    if not use_tiled:
        kernel = functools.partial(encoder_kernel_resident,
                                   h_real=float(H), pad_lanes=float(Hp - H))
        grid_spec = pltpu.PrefetchScalarGridSpec(
            num_scalar_prefetch=0,
            grid=(n_row,),
            in_specs=[
                pl.BlockSpec((tm, Hp), lambda i: (i, 0)),      # x row tile
                const_spec((1, Hp), lambda i: (0, 0)),         # ln gamma
                const_spec((1, Hp), lambda i: (0, 0)),         # ln beta
                const_spec((Hp, Hp), lambda i: (0, 0)),        # W1^T (resident)
                const_spec((1, Hp), lambda i: (0, 0)),         # b1
                const_spec((Hp, Hp), lambda i: (0, 0)),        # W2^T (resident)
                const_spec((1, Hp), lambda i: (0, 0)),         # b2
            ],
            out_specs=pl.BlockSpec((tm, Hp), lambda i: (i, 0)),
        )
        dims = ("parallel",)
        weight_reads = 1
    else:
        n_f = Hp // tf
        kernel = functools.partial(encoder_kernel_tiled,
                                   h_real=float(H), pad_lanes=float(Hp - H))
        grid_spec = pltpu.PrefetchScalarGridSpec(
            num_scalar_prefetch=0,
            grid=(n_row, n_f),
            in_specs=[
                pl.BlockSpec((tm, Hp), lambda i, f: (i, 0)),   # x (resident over f)
                const_spec((1, Hp), lambda i, f: (0, 0)),      # ln gamma
                const_spec((1, Hp), lambda i, f: (0, 0)),      # ln beta
                pl.BlockSpec((Hp, tf), lambda i, f: (0, f)),   # W1^T f-slab (streamed)
                pl.BlockSpec((1, tf), lambda i, f: (0, f)),    # b1 f-slab
                pl.BlockSpec((tf, Hp), lambda i, f: (f, 0)),   # W2^T f-slab (streamed)
                const_spec((1, Hp), lambda i, f: (0, 0)),      # b2
            ],
            out_specs=pl.BlockSpec((tm, Hp), lambda i, f: (i, 0)),
            scratch_shapes=[pltpu.VMEM((tm, Hp), jnp.bfloat16),   # LN(x) cache
                            pltpu.VMEM((tm, Hp), jnp.float32)],   # fc2 accumulator
        )
        dims = ("parallel", "arbitrary")
        weight_reads = n_row          # each weight streamed once per row tile

    cost = pl.CostEstimate(
        flops=2 * 2 * Np * Hp * Hp,                 # two (Np,Hp)x(Hp,Hp) matmuls
        transcendentals=Np,                         # one rsqrt per row
        bytes_accessed=2 * Np * Hp * 4              # x in + out
        + weight_reads * 2 * Hp * Hp * 2            # bf16 weights
        + 6 * Hp * 4,                               # gamma/beta/b1/b2
    )

    return pl.pallas_call(
        kernel,
        out_shape=jax.ShapeDtypeStruct((Np, Hp), out_dtype),
        grid_spec=grid_spec,
        compiler_params=pltpu.CompilerParams(
            dimension_semantics=dims,
            vmem_limit_bytes=_vmem_limit_bytes(),
        ),
        cost_estimate=cost,
    )(*operands)


def prepare_params(params):
    """One-time parameter preprocessing (transpose / zero-pad / bf16 cast).

    Hoisted out of the per-call path so the HxH transpose+cast HBM traffic is
    not paid on every forward call.
    """
    H = params["ln_gamma"].shape[0]
    Hp = _round_up(H, 128)

    def pad_vec(v):
        return jnp.pad(v.astype(jnp.float32), (0, Hp - H)).reshape(1, Hp)

    def pad_w_t(w):
        # PyTorch Linear weight (out, in) -> (in, out), zero-pad, bf16.
        # TODO(synk): fp8 (e4m3) weights on v7x when compute-bound (Hp >= ~640).
        return jnp.pad(w.astype(jnp.float32).T,
                       ((0, Hp - H), (0, Hp - H))).astype(jnp.bfloat16)

    return {
        "H": H,
        "Hp": Hp,
        "gamma": pad_vec(params["ln_gamma"]),
        "beta": pad_vec(params["ln_beta"]),
        "w1_t": pad_w_t(params["fc1_w"]),
        "b1": pad_vec(params["fc1_b"]),
        "w2_t": pad_w_t(params["fc2_w"]),
        "b2": pad_vec(params["fc2_b"]),
    }


def encoder_forward(x, prepared, *, tm=None, tf=None, force_tiled=False,
                    out_dtype=None):
    """x: (B, S, H). prepared: output of prepare_params() for matching H."""
    B, S, H = x.shape
    assert H == prepared["H"], "prepared params were built for a different H"
    Hp = prepared["Hp"]
    N = B * S
    out_dtype = out_dtype or x.dtype

    tm = _choose_tm(tm, N, Hp)
    Np = _round_up(N, tm)
    tf = _choose_tf(tf, Hp)
    use_tiled = force_tiled or not _resident_weights_fit(Hp, tm)

    # Skip the pad (and output slice) entirely in the aligned common case.
    x2 = x.reshape(N, H)
    if x2.dtype != jnp.float32:
        x2 = x2.astype(jnp.float32)
    if Np != N or Hp != H:
        x2 = jnp.pad(x2, ((0, Np - N), (0, Hp - H)))

    run = functools.partial(_encoder_pallas_call, x2, prepared, tm=tm, tf=tf,
                            use_tiled=use_tiled, out_dtype=out_dtype)
    try:
        out2 = run(single_buffer_consts=True)
    except Exception:
        # This JAX/libtpu build doesn't accept pipeline_mode=pl.Buffered(1);
        # fall back to default double-buffering (correct, just more VMEM).
        out2 = run(single_buffer_consts=False)

    if Np != N or Hp != H:
        out2 = out2[:N, :H]
    return out2.reshape(B, S, H)


# --------------------------------------------------------------------------- #
# Parameters / reference / demo
# --------------------------------------------------------------------------- #
def init_params(key, hidden):
    """Deterministic parameter init matching the module's shapes."""
    k1, k2, k3, k4 = jax.random.split(key, 4)
    bound = 1.0 / jnp.sqrt(hidden)
    return {
        "ln_gamma": jnp.ones((hidden,), jnp.float32),
        "ln_beta": jnp.zeros((hidden,), jnp.float32),
        "fc1_w": jax.random.uniform(k1, (hidden, hidden), jnp.float32, -bound, bound),
        "fc1_b": jax.random.uniform(k2, (hidden,), jnp.float32, -bound, bound),
        "fc2_w": jax.random.uniform(k3, (hidden, hidden), jnp.float32, -bound, bound),
        "fc2_b": jax.random.uniform(k4, (hidden,), jnp.float32, -bound, bound),
    }


def _reference(x, p):
    """Pure-JAX f32 reference of the Encoder forward (eval mode)."""
    mean = jnp.mean(x, axis=-1, keepdims=True)
    var = jnp.mean((x - mean) ** 2, axis=-1, keepdims=True)
    xn = (x - mean) / jnp.sqrt(var + LN_EPS)
    xn = xn * p["ln_gamma"] + p["ln_beta"]
    h = jnp.maximum(xn @ p["fc1_w"].T + p["fc1_b"], 0.0)
    return h @ p["fc2_w"].T + p["fc2_b"]


if __name__ == "__main__":
    key = jax.random.PRNGKey(0)
    kx1, kp1, kx2, kp2 = jax.random.split(key, 4)

    # Case 1: small H (resident-weight path). B=2, S=8, H=32.
    B, S, H = 2, 8, 32
    x = jax.random.normal(kx1, (B, S, H), jnp.float32)
    params = init_params(kp1, H)
    prep = prepare_params(params)
    out = jax.block_until_ready(encoder_forward(x, prep))
    ref = _reference(x, params)
    assert out.shape == (B, S, H)
    # bf16 MXU operands (f32 accumulation) -> looser tolerance vs f32 reference.
    assert jnp.allclose(out, ref, atol=5e-2, rtol=5e-2), "resident path mismatch"

    # Case 2: exercise the F-tiled weight-streaming path (H=256, tf=128 ->
    # 2 F steps x 2 row tiles), validating the accumulate/LN-cache machinery.
    B2, S2, H2 = 2, 8, 256
    x2 = jax.random.normal(kx2, (B2, S2, H2), jnp.float32)
    params2 = init_params(kp2, H2)
    prep2 = prepare_params(params2)
    out2 = jax.block_until_ready(
        encoder_forward(x2, prep2, force_tiled=True, tf=128))
    ref2 = _reference(x2, params2)
    assert out2.shape == (B2, S2, H2)
    assert jnp.allclose(out2, ref2, atol=5e-2, rtol=5e-2), "tiled path mismatch"

    print("KERNEL_OK")
</pallas_src>

<mosaic_0001>
module attributes {stable_mosaic.version = 11 : i64} {
  func.func @encoder_kernel_resident(%arg0: i32, %arg1: memref<8x128xf32, #tpu.memory_space<vmem>>, %arg2: memref<1x128xf32, #tpu.memory_space<vmem>>, %arg3: memref<1x128xf32, #tpu.memory_space<vmem>>, %arg4: memref<128x128xbf16, #tpu.memory_space<vmem>>, %arg5: memref<1x128xf32, #tpu.memory_space<vmem>>, %arg6: memref<128x128xbf16, #tpu.memory_space<vmem>>, %arg7: memref<1x128xf32, #tpu.memory_space<vmem>>, %arg8: memref<8x128xf32, #tpu.memory_space<vmem>>) attributes {dimension_semantics = [#tpu.dimension_semantics<parallel>], iteration_bounds = array<i64: 2>, scalar_prefetch = 0 : i64, scratch_operands = 0 : i64, tpu.core_type = #tpu.core_type<tc>, window_params = [{transform_indices = @transform_0, window_bounds = array<i64: 8, 128>}, {pipeline_mode = #tpu.pipeline_mode<synchronous>, transform_indices = @transform_1, window_bounds = array<i64: 1, 128>}, {pipeline_mode = #tpu.pipeline_mode<synchronous>, transform_indices = @transform_2, window_bounds = array<i64: 1, 128>}, {pipeline_mode = #tpu.pipeline_mode<synchronous>, transform_indices = @transform_3, window_bounds = array<i64: 128, 128>}, {pipeline_mode = #tpu.pipeline_mode<synchronous>, transform_indices = @transform_4, window_bounds = array<i64: 1, 128>}, {pipeline_mode = #tpu.pipeline_mode<synchronous>, transform_indices = @transform_5, window_bounds = array<i64: 128, 128>}, {pipeline_mode = #tpu.pipeline_mode<synchronous>, transform_indices = @transform_6, window_bounds = array<i64: 1, 128>}, {transform_indices = @transform_7, window_bounds = array<i64: 8, 128>}]} {
    %c0 = arith.constant 0 : index
    %c0_0 = arith.constant 0 : index
    %0 = vector.load %arg1[%c0, %c0_0] : memref<8x128xf32, #tpu.memory_space<vmem>>, vector<8x128xf32>
    %c0_1 = arith.constant 0 : index
    %c0_2 = arith.constant 0 : index
    %1 = vector.load %arg2[%c0_1, %c0_2] : memref<1x128xf32, #tpu.memory_space<vmem>>, vector<1x128xf32>
    %c0_3 = arith.constant 0 : index
    %c0_4 = arith.constant 0 : index
    %2 = vector.load %arg3[%c0_3, %c0_4] : memref<1x128xf32, #tpu.memory_space<vmem>>, vector<1x128xf32>
    %cst = arith.constant dense<0.000000e+00> : vector<8xf32>
    %3 = vector.multi_reduction <add>, %0, %cst [1] : vector<8x128xf32> to vector<8xf32>
    %4 = vector.shape_cast %3 : vector<8xf32> to vector<8x1xf32>
    %cst_5 = arith.constant 3.125000e-02 : f32
    %5 = vector.broadcast %cst_5 : f32 to vector<8x1xf32>
    %6 = arith.mulf %4, %5 : vector<8x1xf32>
    %7 = vector.broadcast %6 : vector<8x1xf32> to vector<8x128xf32>
    %8 = arith.subf %0, %7 : vector<8x128xf32>
    %9 = arith.mulf %8, %8 : vector<8x128xf32>
    %cst_6 = arith.constant dense<0.000000e+00> : vector<8xf32>
    %10 = vector.multi_reduction <add>, %9, %cst_6 [1] : vector<8x128xf32> to vector<8xf32>
    %11 = vector.shape_cast %10 : vector<8xf32> to vector<8x1xf32>
    %12 = arith.mulf %6, %6 : vector<8x1xf32>
    %cst_7 = arith.constant 9.600000e+01 : f32
    %13 = vector.broadcast %cst_7 : f32 to vector<8x1xf32>
    %14 = arith.mulf %13, %12 : vector<8x1xf32>
    %15 = arith.subf %11, %14 : vector<8x1xf32>
    %cst_8 = arith.constant 3.125000e-02 : f32
    %16 = vector.broadcast %cst_8 : f32 to vector<8x1xf32>
    %17 = arith.mulf %15, %16 : vector<8x1xf32>
    %cst_9 = arith.constant 0.000000e+00 : f32
    %18 = vector.broadcast %cst_9 : f32 to vector<8x1xf32>
    %19 = arith.maximumf %17, %18 : vector<8x1xf32>
    %cst_10 = arith.constant 9.99999974E-6 : f32
    %20 = vector.broadcast %cst_10 : f32 to vector<8x1xf32>
    %21 = arith.addf %19, %20 : vector<8x1xf32>
    %22 = math.rsqrt %21 : vector<8x1xf32>
    %23 = vector.broadcast %22 : vector<8x1xf32> to vector<8x128xf32>
    %24 = arith.mulf %8, %23 : vector<8x128xf32>
    %25 = vector.broadcast %1 : vector<1x128xf32> to vector<8x128xf32>
    %26 = arith.mulf %24, %25 : vector<8x128xf32>
    %27 = vector.broadcast %2 : vector<1x128xf32> to vector<8x128xf32>
    %28 = arith.addf %26, %27 : vector<8x128xf32>
    %29 = arith.truncf %28 : vector<8x128xf32> to vector<8x128xbf16>
    %c0_11 = arith.constant 0 : index
    %c0_12 = arith.constant 0 : index
    %30 = vector.load %arg4[%c0_11, %c0_12] : memref<128x128xbf16, #tpu.memory_space<vmem>>, vector<128x128xbf16>
    %cst_13 = arith.constant dense<0.000000e+00> : vector<8x128xf32>
    %31 = tpu.matmul %29, %30, %cst_13 {dimension_numbers = #tpu.dot_dimension_numbers<[1], [0], [0], [1], [0, 0, 1, 1], [], []>} : vector<8x128xbf16>, vector<128x128xbf16>, vector<8x128xf32> -> vector<8x128xf32>
    %c0_14 = arith.constant 0 : index
    %c0_15 = arith.constant 0 : index
    %32 = vector.load %arg5[%c0_14, %c0_15] : memref<1x128xf32, #tpu.memory_space<vmem>>, vector<1x128xf32>
    %33 = vector.broadcast %32 : vector<1x128xf32> to vector<8x128xf32>
    %34 = arith.addf %31, %33 : vector<8x128xf32>
    %cst_16 = arith.constant 0.000000e+00 : f32
    %35 = vector.broadcast %cst_16 : f32 to vector<8x128xf32>
    %36 = arith.maximumf %34, %35 : vector<8x128xf32>
    %37 = arith.truncf %36 : vector<8x128xf32> to vector<8x128xbf16>
    %c0_17 = arith.constant 0 : index
    %c0_18 = arith.constant 0 : index
    %38 = vector.load %arg6[%c0_17, %c0_18] : memref<128x128xbf16, #tpu.memory_space<vmem>>, vector<128x128xbf16>
    %cst_19 = arith.constant dense<0.000000e+00> : vector<8x128xf32>
    %39 = tpu.matmul %37, %38, %cst_19 {dimension_numbers = #tpu.dot_dimension_numbers<[1], [0], [0], [1], [0, 0, 1, 1], [], []>} : vector<8x128xbf16>, vector<128x128xbf16>, vector<8x128xf32> -> vector<8x128xf32>
    %c0_20 = arith.constant 0 : index
    %c0_21 = arith.constant 0 : index
    %40 = vector.load %arg7[%c0_20, %c0_21] : memref<1x128xf32, #tpu.memory_space<vmem>>, vector<1x128xf32>
    %41 = vector.broadcast %40 : vector<1x128xf32> to vector<8x128xf32>
    %42 = arith.addf %39, %41 : vector<8x128xf32>
    %c0_22 = arith.constant 0 : index
    %c0_23 = arith.constant 0 : index
    %43 = vector.load %arg8[%c0_22, %c0_23] : memref<8x128xf32, #tpu.memory_space<vmem>>, vector<8x128xf32>
    tpu.vector_store %arg8[%c0_22, %c0_23], %42 {strides = array<i32>} : memref<8x128xf32, #tpu.memory_space<vmem>>, vector<8x128xf32>,
    return
  }
  func.func @transform_0(%arg0: i32) -> (i32, i32) {
    %c0_i32 = arith.constant 0 : i32
    %c0_i32_0 = arith.constant 0 : i32
    return %arg0, %c0_i32 : i32, i32
  }
  func.func @transform_1(%arg0: i32) -> (i32, i32) {
    %c0_i32 = arith.constant 0 : i32
    %c0_i32_0 = arith.constant 0 : i32
    %c0_i32_1 = arith.constant 0 : i32
    return %c0_i32, %c0_i32_0 : i32, i32
  }
  func.func @transform_2(%arg0: i32) -> (i32, i32) {
    %c0_i32 = arith.constant 0 : i32
    %c0_i32_0 = arith.constant 0 : i32
    %c0_i32_1 = arith.constant 0 : i32
    return %c0_i32, %c0_i32_0 : i32, i32
  }
  func.func @transform_3(%arg0: i32) -> (i32, i32) {
    %c0_i32 = arith.constant 0 : i32
    %c0_i32_0 = arith.constant 0 : i32
    %c0_i32_1 = arith.constant 0 : i32
    return %c0_i32, %c0_i32_0 : i32, i32
  }
  func.func @transform_4(%arg0: i32) -> (i32, i32) {
    %c0_i32 = arith.constant 0 : i32
    %c0_i32_0 = arith.constant 0 : i32
    %c0_i32_1 = arith.constant 0 : i32
    return %c0_i32, %c0_i32_0 : i32, i32
  }
  func.func @transform_5(%arg0: i32) -> (i32, i32) {
    %c0_i32 = arith.constant 0 : i32
    %c0_i32_0 = arith.constant 0 : i32
    %c0_i32_1 = arith.constant 0 : i32
    return %c0_i32, %c0_i32_0 : i32, i32
  }
  func.func @transform_6(%arg0: i32) -> (i32, i32) {
    %c0_i32 = arith.constant 0 : i32
    %c0_i32_0 = arith.constant 0 : i32
    %c0_i32_1 = arith.constant 0 : i32
    return %c0_i32, %c0_i32_0 : i32, i32
  }
  func.func @transform_7(%arg0: i32) -> (i32, i32) {
    %c0_i32 = arith.constant 0 : i32
    %c0_i32_0 = arith.constant 0 : i32
    return %arg0, %c0_i32 : i32, i32
  }
}

module attributes {stable_mosaic.version = 11 : i64} {
  func.func @encoder_kernel_resident(%arg0: i32, %arg1: memref<8x128xf32, #tpu.memory_space<vmem>>, %arg2: memref<1x128xf32, #tpu.memory_space<vmem>>, %arg3: memref<1x128xf32, #tpu.memory_space<vmem>>, %arg4: memref<128x128xbf16, #tpu.memory_space<vmem>>, %arg5: memref<1x128xf32, #tpu.memory_space<vmem>>, %arg6: memref<128x128xbf16, #tpu.memory_space<vmem>>, %arg7: memref<1x128xf32, #tpu.memory_space<vmem>>, %arg8: memref<8x128xf32, #tpu.memory_space<vmem>>) attributes {dimension_semantics = [#tpu.dimension_semantics<parallel>], iteration_bounds = array<i64: 2>, scalar_prefetch = 0 : i64, scratch_operands = 0 : i64, tpu.core_type = #tpu.core_type<tc>, window_params = [{transform_indices = @transform_0, window_bounds = array<i64: 8, 128>}, {pipeline_mode = #tpu.pipeline_mode<synchronous>, transform_indices = @transform_1, window_bounds = array<i64: 1, 128>}, {pipeline_mode = #tpu.pipeline_mode<synchronous>, transform_indices = @transform_2, window_bounds = array<i64: 1, 128>}, {pipeline_mode = #tpu.pipeline_mode<synchronous>, transform_indices = @transform_3, window_bounds = array<i64: 128, 128>}, {pipeline_mode = #tpu.pipeline_mode<synchronous>, transform_indices = @transform_4, window_bounds = array<i64: 1, 128>}, {pipeline_mode = #tpu.pipeline_mode<synchronous>, transform_indices = @transform_5, window_bounds = array<i64: 128, 128>}, {pipeline_mode = #tpu.pipeline_mode<synchronous>, transform_indices = @transform_6, window_bounds = array<i64: 1, 128>}, {transform_indices = @transform_7, window_bounds = array<i64: 8, 128>}]} {
    %c0 = arith.constant 0 : index
    %c0_0 = arith.constant 0 : index
    %0 = vector.load %arg1[%c0, %c0_0] : memref<8x128xf32, #tpu.memory_space<vmem>>, vector<8x128xf32>
    %c0_1 = arith.constant 0 : index
    %c0_2 = arith.constant 0 : index
    %1 = vector.load %arg2[%c0_1, %c0_2] : memref<1x128xf32, #tpu.memory_space<vmem>>, vector<1x128xf32>
    %c0_3 = arith.constant 0 : index
    %c0_4 = arith.constant 0 : index
    %2 = vector.load %arg3[%c0_3, %c0_4] : memref<1x128xf32, #tpu.memory_space<vmem>>, vector<1x128xf32>
    %cst = arith.constant dense<0.000000e+00> : vector<8xf32>
    %3 = vector.multi_reduction <add>, %0, %cst [1] : vector<8x128xf32> to vector<8xf32>
    %4 = vector.shape_cast %3 : vector<8xf32> to vector<8x1xf32>
    %cst_5 = arith.constant 3.125000e-02 : f32
    %5 = vector.broadcast %cst_5 : f32 to vector<8x1xf32>
    %6 = arith.mulf %4, %5 : vector<8x1xf32>
    %7 = vector.broadcast %6 : vector<8x1xf32> to vector<8x128xf32>
    %8 = arith.subf %0, %7 : vector<8x128xf32>
    %9 = arith.mulf %8, %8 : vector<8x128xf32>
    %cst_6 = arith.constant dense<0.000000e+00> : vector<8xf32>
    %10 = vector.multi_reduction <add>, %9, %cst_6 [1] : vector<8x128xf32> to vector<8xf32>
    %11 = vector.shape_cast %10 : vector<8xf32> to vector<8x1xf32>
    %12 = arith.mulf %6, %6 : vector<8x1xf32>
    %cst_7 = arith.constant 9.600000e+01 : f32
    %13 = vector.broadcast %cst_7 : f32 to vector<8x1xf32>
    %14 = arith.mulf %13, %12 : vector<8x1xf32>
    %15 = arith.subf %11, %14 : vector<8x1xf32>
    %cst_8 = arith.constant 3.125000e-02 : f32
    %16 = vector.broadcast %cst_8 : f32 to vector<8x1xf32>
    %17 = arith.mulf %15, %16 : vector<8x1xf32>
    %cst_9 = arith.constant 0.000000e+00 : f32
    %18 = vector.broadcast %cst_9 : f32 to vector<8x1xf32>
    %19 = arith.maximumf %17, %18 : vector<8x1xf32>
    %cst_10 = arith.constant 9.99999974E-6 : f32
    %20 = vector.broadcast %cst_10 : f32 to vector<8x1xf32>
    %21 = arith.addf %19, %20 : vector<8x1xf32>
    %22 = math.rsqrt %21 : vector<8x1xf32>
    %23 = vector.broadcast %22 : vector<8x1xf32> to vector<8x128xf32>
    %24 = arith.mulf %8, %23 : vector<8x128xf32>
    %25 = vector.broadcast %1 : vector<1x128xf32> to vector<8x128xf32>
    %26 = arith.mulf %24, %25 : vector<8x128xf32>
    %27 = vector.broadcast %2 : vector<1x128xf32> to vector<8x128xf32>
    %28 = arith.addf %26, %27 : vector<8x128xf32>
    %29 = arith.truncf %28 : vector<8x128xf32> to vector<8x128xbf16>
    %c0_11 = arith.constant 0 : index
    %c0_12 = arith.constant 0 : index
    %30 = vector.load %arg4[%c0_11, %c0_12] : memref<128x128xbf16, #tpu.memory_space<vmem>>, vector<128x128xbf16>
    %cst_13 = arith.constant dense<0.000000e+00> : vector<8x128xf32>
    %31 = tpu.matmul %29, %30, %cst_13 {dimension_numbers = #tpu.dot_dimension_numbers<[1], [0], [0], [1], [0, 0, 1, 1], [], []>} : vector<8x128xbf16>, vector<128x128xbf16>, vector<8x128xf32> -> vector<8x128xf32>
    %c0_14 = arith.constant 0 : index
    %c0_15 = arith.constant 0 : index
    %32 = vector.load %arg5[%c0_14, %c0_15] : memref<1x128xf32, #tpu.memory_space<vmem>>, vector<1x128xf32>
    %33 = vector.broadcast %32 : vector<1x128xf32> to vector<8x128xf32>
    %34 = arith.addf %31, %33 : vector<8x128xf32>
    %cst_16 = arith.constant 0.000000e+00 : f32
    %35 = vector.broadcast %cst_16 : f32 to vector<8x128xf32>
    %36 = arith.maximumf %34, %35 : vector<8x128xf32>
    %37 = arith.truncf %36 : vector<8x128xf32> to vector<8x128xbf16>
    %c0_17 = arith.constant 0 : index
    %c0_18 = arith.constant 0 : index
    %38 = vector.load %arg6[%c0_17, %c0_18] : memref<128x128xbf16, #tpu.memory_space<vmem>>, vector<128x128xbf16>
    %cst_19 = arith.constant dense<0.000000e+00> : vector<8x128xf32>
    %39 = tpu.matmul %37, %38, %cst_19 {dimension_numbers = #tpu.dot_dimension_numbers<[1], [0], [0], [1], [0, 0, 1, 1], [], []>} : vector<8x128xbf16>, vector<128x128xbf16>, vector<8x128xf32> -> vector<8x128xf32>
    %c0_20 = arith.constant 0 : index
    %c0_21 = arith.constant 0 : index
    %40 = vector.load %arg7[%c0_20, %c0_21] : memref<1x128xf32, #tpu.memory_space<vmem>>, vector<1x128xf32>
    %41 = vector.broadcast %40 : vector<1x128xf32> to vector<8x128xf32>
    %42 = arith.addf %39, %41 : vector<8x128xf32>
    %c0_22 = arith.constant 0 : index
    %c0_23 = arith.constant 0 : index
    %43 = vector.load %arg8[%c0_22, %c0_23] : memref<8x128xf32, #tpu.memory_space<vmem>>, vector<8x128xf32>
    tpu.vector_store %arg8[%c0_22, %c0_23], %42 {strides = array<i32>} : memref<8x128xf32, #tpu.memory_space<vmem>>, vector<8x128xf32>,
    return
  }
  func.func @transform_0(%arg0: i32) -> (i32, i32) {
    %c0_i32 = arith.constant 0 : i32
    %c0_i32_0 = arith.constant 0 : i32
    return %arg0, %c0_i32 : i32, i32
  }
  func.func @transform_1(%arg0: i32) -> (i32, i32) {
    %c0_i32 = arith.constant 0 : i32
    %c0_i32_0 = arith.constant 0 : i32
    %c0_i32_1 = arith.constant 0 : i32
    return %c0_i32, %c0_i32_0 : i32, i32
  }
  func.func @transform_2(%arg0: i32) -> (i32, i32) {
    %c0_i32 = arith.constant 0 : i32
    %c0_i32_0 = arith.constant 0 : i32
    %c0_i32_1 = arith.constant 0 : i32
    return %c0_i32, %c0_i32_0 : i32, i32
  }
  func.func @transform_3(%arg0: i32) -> (i32, i32) {
    %c0_i32 = arith.constant 0 : i32
    %c0_i32_0 = arith.constant 0 : i32
    %c0_i32_1 = arith.constant 0 : i32
    return %c0_i32, %c0_i32_0 : i32, i32
  }
  func.func @transform_4(%arg0: i32) -> (i32, i32) {
    %c0_i32 = arith.constant 0 : i32
    %c0_i32_0 = arith.constant 0 : i32
    %c0_i32_1 = arith.constant 0 : i32
    return %c0_i32, %c0_i32_0 : i32, i32
  }
  func.func @transform_5(%arg0: i32) -> (i32, i32) {
    %c0_i32 = arith.constant 0 : i32
    %c0_i32_0 = arith.constant 0 : i32
    %c0_i32_1 = arith.constant 0 : i32
    return %c0_i32, %c0_i32_0 : i32, i32
  }
  func.func @transform_6(%arg0: i32) -> (i32, i32) {
    %c0_i32 = arith.constant 0 : i32
    %c0_i32_0 = arith.constant 0 : i32
    %c0_i32_1 = arith.constant 0 : i32
    return %c0_i32, %c0_i32_0 : i32, i32
  }
  func.func @transform_7(%arg0: i32) -> (i32, i32) {
    %c0_i32 = arith.constant 0 : i32
    %c0_i32_0 = arith.constant 0 : i32
    return %arg0, %c0_i32 : i32, i32
  }
}

</mosaic_0001>

<llo_original>
// kernel: tpu_custom_call.1
$region0: #{tpu_custom_call.1}
  #allocation0 [shape = 'u32[]', space=smem, size = 0x4, offset = 0x4, fixed_abs, tag = 'smem constant byte address 0x4 - core index']
  #allocation1 [shape = 'u32[144,128]{1,0:T(1,128)}', space=vmem, size = 0x12000, scoped, tag = 'internal scratch']
  %s0 = inlined_call_operand.hbm [shape: f32[16,128], index: 0, kind: input, shape index: {}]
  %s1 = inlined_call_operand.vmem [shape: f32[1,128], index: 1, kind: input, shape index: {}]
  %s2 = inlined_call_operand.vmem [shape: f32[1,128], index: 2, kind: input, shape index: {}]
  %s3 = inlined_call_operand.hbm [shape: bf16[128,128], index: 3, kind: input, shape index: {}]
  %s4 = inlined_call_operand.vmem [shape: f32[1,128], index: 4, kind: input, shape index: {}]
  %s5 = inlined_call_operand.hbm [shape: bf16[128,128], index: 5, kind: input, shape index: {}]
  %s6 = inlined_call_operand.vmem [shape: f32[1,128], index: 6, kind: input, shape index: {}]
  %s7 = inlined_call_operand.hbm [shape: f32[16,128], index: 7, kind: output, shape index: {}]
  %s8 = sld [smem:[#allocation0]]
  $region73: #{tpu_custom_call.1} parent=0
    _
  %s10 = ssub.s32 1, %s8
  %s11 = scalar_select 0, %s10, %s8
  $region1: #{tpu_custom_call.1} parent=0
    #allocation2 [shape = 'u8[8192]{0}', space=vmem, size = 0x2000, scoped, tag = 'input window, operand 0']
    #allocation3 [shape = 's32[2]{0}', space=sflag, size = 0x8, scoped, tag = 'scoped memory for tpu_custom_call.1']
    #allocation4 [shape = 's32[2]{0}', space=sflag, size = 0x8, scoped, tag = 'scoped memory for tpu_custom_call.1']
    #allocation5 [shape = 'u8[32768]{0}', space=vmem, size = 0x8000, scoped, tag = 'input window, operand 3, single buffered']
    #allocation6 [shape = 's32[1]{0}', space=sflag, size = 0x4, scoped, tag = 'scoped memory for tpu_custom_call.1']
    #allocation7 [shape = 'u8[32768]{0}', space=vmem, size = 0x8000, scoped, tag = 'input window, operand 5, single buffered']
    #allocation8 [shape = 'u8[8192]{0}', space=vmem, size = 0x2000, scoped, tag = 'output window, operand 0']
    %12 = vsyncpa [#allocation3], 0
    %s13 = scalar_lea.sflag [#allocation3], 1
    %14 = vsyncpa %s13, 0
    %15 = vsyncpa [#allocation6], 0
    %16 = vsyncpa [#allocation4], 0
    %s17 = scalar_lea.sflag [#allocation4], 1
    %18 = vsyncpa %s17, 0
    loop: start=0, step=1, limit=4
    $region2: #{tpu_custom_call.1} parent=1 // loop_pre_header
      _
    $region3: #{tpu_custom_call.1} parent=1 // loop_header
      %s20 = sphi 0, %s24
      %p21 = scmp.ge.s32.totalorder %s20, 4
      %s30 = sphi 0, %s32
      %s33 = sphi 0, %s30
      %s34 = sphi 0, %s33
      %s50 = sphi 0, %s34
      %s54 = sphi 0, %s54
      %s56 = sphi 0, %s54
      %s57 = sphi 0, %s56
      %s71 = sphi 0, %s57
      %s75 = sphi 0, %s75
      %s77 = sphi 0, %s75
      %s78 = sphi 0, %s77
      %s92 = sphi 0, %s78
      %s96 = sphi 0, %s96
      %s98 = sphi 0, %s96
      %s99 = sphi 0, %s98
      %s113 = sphi 0, %s99
      %s117 = sphi 0, %s117
      %s119 = sphi 0, %s117
      %s120 = sphi 0, %s119
      %s134 = sphi 0, %s120
      %s138 = sphi 0, %s138
      %s140 = sphi 0, %s138
      %s141 = sphi 0, %s140
      %s155 = sphi 0, %s141
      %s159 = sphi 0, %s159
      %s161 = sphi 0, %s159
      %s162 = sphi 0, %s161
      %s176 = sphi 0, %s162
      %s182 = sphi 0, %s184
      %s185 = sphi 0, %s182
      %s186 = sphi 0, %s185
      %s202 = sphi 0, %s186
    $region4: #{tpu_custom_call.1} parent=1 // loop_header_branch
      %23 = sbr.rel (%p21) target = $region8
    $region5: #{tpu_custom_call.1} parent=1 // loop_body
      %s25 = ssub.s32 %s20, 1
      %s26 = ssub.s32 %s20, 2
      %s27 = sadd.s32 %s20, 1
      %s28 = ssub.s32 %s20, %s27
      %p29 = scmp.eq.s32.totalorder %s28, 0
      %s31 = sadd.s32 %s30, 1
      %s32 = scalar_select %p29, %s30, %s31
      %p35 = pneg %p29
      %p36 = scmp.eq.s32.totalorder %s20, 1
      %p37 = por %p35, %p36
      %p38 = scmp.ne.s32.totalorder %s30, %s33
      %p39 = scmp.eq.s32.totalorder %s20, 0
      %p40 = por %p38, %p39
      %p41 = scmp.ne.s32.totalorder %s30, %s33
      %p42 = scmp.eq.s32.totalorder %s25, 1
      %p43 = por %p41, %p42
      %p44 = scmp.ne.s32.totalorder %s33, %s34
      %p45 = scmp.eq.s32.totalorder %s25, 0
      %p46 = por %p44, %p45
      %p47 = scmp.ne.s32.totalorder %s33, %s34
      %p48 = scmp.eq.s32.totalorder %s26, 1
      %p49 = por %p47, %p48
      %p51 = scmp.ne.s32.totalorder %s34, %s50
      %p52 = scmp.eq.s32.totalorder %s26, 0
      %p53 = por %p51, %p52
      %s55 = sadd.s32 %s54, 1
      %p58 = scmp.eq.s32.totalorder %s20, 1
      %p59 = scmp.ne.s32.totalorder %s54, %s56
      %p60 = scmp.eq.s32.totalorder %s20, 0
      %p61 = por %p59, %p60
      %p62 = scmp.ne.s32.totalorder %s54, %s56
      %p63 = scmp.eq.s32.totalorder %s25, 1
      %p64 = por %p62, %p63
      %p65 = scmp.ne.s32.totalorder %s56, %s57
      %p66 = scmp.eq.s32.totalorder %s25, 0
      %p67 = por %p65, %p66
      %p68 = scmp.ne.s32.totalorder %s56, %s57
      %p69 = scmp.eq.s32.totalorder %s26, 1
      %p70 = por %p68, %p69
      %p72 = scmp.ne.s32.totalorder %s57, %s71
      %p73 = scmp.eq.s32.totalorder %s26, 0
      %p74 = por %p72, %p73
      %s76 = sadd.s32 %s75, 1
      %p79 = scmp.eq.s32.totalorder %s20, 1
      %p80 = scmp.ne.s32.totalorder %s75, %s77
      %p81 = scmp.eq.s32.totalorder %s20, 0
      %p82 = por %p80, %p81
      %p83 = scmp.ne.s32.totalorder %s75, %s77
      %p84 = scmp.eq.s32.totalorder %s25, 1
      %p85 = por %p83, %p84
      %p86 = scmp.ne.s32.totalorder %s77, %s78
      %p87 = scmp.eq.s32.totalorder %s25, 0
      %p88 = por %p86, %p87
      %p89 = scmp.ne.s32.totalorder %s77, %s78
      %p90 = scmp.eq.s32.totalorder %s26, 1
      %p91 = por %p89, %p90
      %p93 = scmp.ne.s32.totalorder %s78, %s92
      %p94 = scmp.eq.s32.totalorder %s26, 0
      %p95 = por %p93, %p94
      %s97 = sadd.s32 %s96, 1
      %p100 = scmp.eq.s32.totalorder %s20, 1
      %p101 = scmp.ne.s32.totalorder %s96, %s98
      %p102 = scmp.eq.s32.totalorder %s20, 0
      %p103 = por %p101, %p102
      %p104 = scmp.ne.s32.totalorder %s96, %s98
      %p105 = scmp.eq.s32.totalorder %s25, 1
      %p106 = por %p104, %p105
      %p107 = scmp.ne.s32.totalorder %s98, %s99
      %p108 = scmp.eq.s32.totalorder %s25, 0
      %p109 = por %p107, %p108
      %p110 = scmp.ne.s32.totalorder %s98, %s99
      %p111 = scmp.eq.s32.totalorder %s26, 1
      %p112 = por %p110, %p111
      %p114 = scmp.ne.s32.totalorder %s99, %s113
      %p115 = scmp.eq.s32.totalorder %s26, 0
      %p116 = por %p114, %p115
      %s118 = sadd.s32 %s117, 1
      %p121 = scmp.eq.s32.totalorder %s20, 1
      %p122 = scmp.ne.s32.totalorder %s117, %s119
      %p123 = scmp.eq.s32.totalorder %s20, 0
      %p124 = por %p122, %p123
      %p125 = scmp.ne.s32.totalorder %s117, %s119
      %p126 = scmp.eq.s32.totalorder %s25, 1
      %p127 = por %p125, %p126
      %p128 = scmp.ne.s32.totalorder %s119, %s120
      %p129 = scmp.eq.s32.totalorder %s25, 0
      %p130 = por %p128, %p129
      %p131 = scmp.ne.s32.totalorder %s119, %s120
      %p132 = scmp.eq.s32.totalorder %s26, 1
      %p133 = por %p131, %p132
      %p135 = scmp.ne.s32.totalorder %s120, %s134
      %p136 = scmp.eq.s32.totalorder %s26, 0
      %p137 = por %p135, %p136
      %s139 = sadd.s32 %s138, 1
      %p142 = scmp.eq.s32.totalorder %s20, 1
      %p143 = scmp.ne.s32.totalorder %s138, %s140
      %p144 = scmp.eq.s32.totalorder %s20, 0
      %p145 = por %p143, %p144
      %p146 = scmp.ne.s32.totalorder %s138, %s140
      %p147 = scmp.eq.s32.totalorder %s25, 1
      %p148 = por %p146, %p147
      %p149 = scmp.ne.s32.totalorder %s140, %s141
      %p150 = scmp.eq.s32.totalorder %s25, 0
      %p151 = por %p149, %p150
      %p152 = scmp.ne.s32.totalorder %s140, %s141
      %p153 = scmp.eq.s32.totalorder %s26, 1
      %p154 = por %p152, %p153
      %p156 = scmp.ne.s32.totalorder %s141, %s155
      %p157 = scmp.eq.s32.totalorder %s26, 0
      %p158 = por %p156, %p157
      %s160 = sadd.s32 %s159, 1
      %p163 = scmp.eq.s32.totalorder %s20, 1
      %p164 = scmp.ne.s32.totalorder %s159, %s161
      %p165 = scmp.eq.s32.totalorder %s20, 0
      %p166 = por %p164, %p165
      %p167 = scmp.ne.s32.totalorder %s159, %s161
      %p168 = scmp.eq.s32.totalorder %s25, 1
      %p169 = por %p167, %p168
      %p170 = scmp.ne.s32.totalorder %s161, %s162
      %p171 = scmp.eq.s32.totalorder %s25, 0
      %p172 = por %p170, %p171
      %p173 = scmp.ne.s32.totalorder %s161, %s162
      %p174 = scmp.eq.s32.totalorder %s26, 1
      %p175 = por %p173, %p174
      %p177 = scmp.ne.s32.totalorder %s162, %s176
      %p178 = scmp.eq.s32.totalorder %s26, 0
      %p179 = por %p177, %p178
      %s180 = ssub.s32 %s20, %s27
      %p181 = scmp.eq.s32.totalorder %s180, 0
      %s183 = sadd.s32 %s182, 1
      %s184 = scalar_select %p181, %s182, %s183
      %p187 = pneg %p181
      %p188 = scmp.eq.s32.totalorder %s20, 1
      %p189 = por %p187, %p188
      %p190 = scmp.ne.s32.totalorder %s182, %s185
      %p191 = scmp.eq.s32.totalorder %s20, 0
      %p192 = por %p190, %p191
      %p193 = scmp.ne.s32.totalorder %s182, %s185
      %p194 = scmp.eq.s32.totalorder %s25, 1
      %p195 = por %p193, %p194
      %p196 = scmp.ne.s32.totalorder %s185, %s186
      %p197 = scmp.eq.s32.totalorder %s25, 0
      %p198 = por %p196, %p197
      %p199 = scmp.ne.s32.totalorder %s185, %s186
      %p200 = scmp.eq.s32.totalorder %s26, 1
      %p201 = por %p199, %p200
      %p203 = scmp.ne.s32.totalorder %s186, %s202
      %p204 = scmp.eq.s32.totalorder %s26, 0
      %p205 = por %p203, %p204
      %p206 = scmp.le.s32.totalorder 1, %s20
      %p207 = scmp.lt.s32.totalorder %s20, 3
      %p208 = pnand %p206, %p207
      %p209 = pneg %p208
      // Predicated region
      $region9: #{tpu_custom_call.1} parent=5 // pred_check
        _
      $region10: #{tpu_custom_call.1} parent=5 // pred_check_branch
        %211 = sbr.rel (%p208) target = $region12
      $region11: #{tpu_custom_call.1} parent=5 // pred_region
        %s212 = ssub.s32 %s20, 1
        // Predicated region
        $region13: #{tpu_custom_call.1} parent=11 // pred_check
          %p213 = pneg %p67
        $region14: #{tpu_custom_call.1} parent=11 // pred_check_branch
          %215 = sbr.rel (%p213) target = $region16
        $region15: #{tpu_custom_call.1} parent=11 // pred_region
          _
        $region16: #{tpu_custom_call.1} parent=11 // pred_fallthru
          _
        // Predicated region
        $region17: #{tpu_custom_call.1} parent=11 // pred_check
          %p216 = pneg %p88
        $region18: #{tpu_custom_call.1} parent=11 // pred_check_branch
          %218 = sbr.rel (%p216) target = $region20
        $region19: #{tpu_custom_call.1} parent=11 // pred_region
          _
        $region20: #{tpu_custom_call.1} parent=11 // pred_fallthru
          _
        // Predicated region
        $region21: #{tpu_custom_call.1} parent=11 // pred_check
          %p219 = pneg %p109
        $region22: #{tpu_custom_call.1} parent=11 // pred_check_branch
          %221 = sbr.rel (%p219) target = $region24
        $region23: #{tpu_custom_call.1} parent=11 // pred_region
          %s223 = ssub.s32 1024, 1024
          %224 = vsyncadd [#allocation6], %s223
          %s225 = sshll.u32 [#allocation5], 4
          %s226 = int_to_ptr.vmem [resolvable:$true] %s225
          %231 = dma.hbm_to_vmem [thread:$0]  %s3, 1024, %s226, [#allocation6], 64, 64, 4
        $region24: #{tpu_custom_call.1} parent=11 // pred_fallthru
          _
        // Predicated region
        $region25: #{tpu_custom_call.1} parent=11 // pred_check
          %p232 = pneg %p130
        $region26: #{tpu_custom_call.1} parent=11 // pred_check_branch
          %234 = sbr.rel (%p232) target = $region28
        $region27: #{tpu_custom_call.1} parent=11 // pred_region
          _
        $region28: #{tpu_custom_call.1} parent=11 // pred_fallthru
          _
        // Predicated region
        $region29: #{tpu_custom_call.1} parent=11 // pred_check
          %p235 = pneg %p151
        $region30: #{tpu_custom_call.1} parent=11 // pred_check_branch
          %237 = sbr.rel (%p235) target = $region32
        $region31: #{tpu_custom_call.1} parent=11 // pred_region
          %s239 = ssub.s32 1024, 1024
          %240 = vsyncadd [#allocation6], %s239
          %s241 = sshll.u32 [#allocation7], 4
          %s242 = int_to_ptr.vmem [resolvable:$true] %s241
          %247 = dma.hbm_to_vmem [thread:$0]  %s5, 1024, %s242, [#allocation6], 64, 64, 4
        $region32: #{tpu_custom_call.1} parent=11 // pred_fallthru
          _
        // Predicated region
        $region33: #{tpu_custom_call.1} parent=11 // pred_check
          %p248 = pneg %p172
        $region34: #{tpu_custom_call.1} parent=11 // pred_check_branch
          %250 = sbr.rel (%p248) target = $region36
        $region35: #{tpu_custom_call.1} parent=11 // pred_region
          _
        $region36: #{tpu_custom_call.1} parent=11 // pred_fallthru
          _
      $region12: #{tpu_custom_call.1} parent=5 // pred_fallthru
        _
      %p251 = scmp.lt.s32.totalorder %s20, 2
      // Predicated region
      $region37: #{tpu_custom_call.1} parent=5 // pred_check
        %p252 = pneg %p251
      $region38: #{tpu_custom_call.1} parent=5 // pred_check_branch
        %254 = sbr.rel (%p252) target = $region40
      $region39: #{tpu_custom_call.1} parent=5 // pred_region
        // Predicated region
        $region41: #{tpu_custom_call.1} parent=39 // pred_check
          %p255 = pneg %p40
        $region42: #{tpu_custom_call.1} parent=39 // pred_check_branch
          %257 = sbr.rel (%p255) target = $region44
        $region43: #{tpu_custom_call.1} parent=39 // pred_region
          %s258 = sand.u32 %s30, 1
          %s259 = scalar_lea.sflag [#allocation3], %s258
          %s260 = sand.u32 %s30, 1
          %s261 = smul.addr %s260, 8
          %s262 = scalar_lea.vmem [#allocation2], %s261
          %s264 = ssub.s32 128, 128
          %265 = vsyncadd %s259, %s264
          %s266 = smul.addr %s20, 128
          %s267 = scalar_lea.hbm %s0, %s266
          %s269 = sshll.u32 %s262, 4
          %s270 = int_to_ptr.vmem [resolvable:$true] %s269
          %272 = dma.hbm_to_vmem [thread:$0]  %s267, 128, %s270, %s259
        $region44: #{tpu_custom_call.1} parent=39 // pred_fallthru
          _
      $region40: #{tpu_custom_call.1} parent=5 // pred_fallthru
        _
      %p273 = scmp.le.s32.totalorder 1, %s20
      %p274 = scmp.lt.s32.totalorder %s20, 3
      %p275 = pnand %p273, %p274
      %p276 = pneg %p275
      // Predicated region
      $region45: #{tpu_custom_call.1} parent=5 // pred_check
        _
      $region46: #{tpu_custom_call.1} parent=5 // pred_check_branch
        %278 = sbr.rel (%p275) target = $region48
      $region47: #{tpu_custom_call.1} parent=5 // pred_region
        %s279 = ssub.s32 %s20, 1
        %s280 = sand.u32 %s33, 1
        %s281 = scalar_lea.sflag [#allocation3], %s280
        %s282 = sand.u32 %s33, 1
        %s283 = smul.addr %s282, 8
        %s284 = scalar_lea.vmem [#allocation2], %s283
        // Predicated region
        $region49: #{tpu_custom_call.1} parent=47 // pred_check
          %p285 = pneg %p46
        $region50: #{tpu_custom_call.1} parent=47 // pred_check_branch
          %287 = sbr.rel (%p285) target = $region52
        $region51: #{tpu_custom_call.1} parent=47 // pred_region
          %288 = dma.done %s281, 128
        $region52: #{tpu_custom_call.1} parent=47 // pred_fallthru
          _
        // Predicated region
        $region53: #{tpu_custom_call.1} parent=47 // pred_check
          %p289 = pneg %p109
        $region54: #{tpu_custom_call.1} parent=47 // pred_check_branch
          %291 = sbr.rel (%p289) target = $region56
        $region55: #{tpu_custom_call.1} parent=47 // pred_region
          %292 = dma.done [#allocation6], 1024
        $region56: #{tpu_custom_call.1} parent=47 // pred_fallthru
          _
        // Predicated region
        $region57: #{tpu_custom_call.1} parent=47 // pred_check
          %p293 = pneg %p151
        $region58: #{tpu_custom_call.1} parent=47 // pred_check_branch
          %295 = sbr.rel (%p293) target = $region60
        $region59: #{tpu_custom_call.1} parent=47 // pred_region
          %296 = dma.done [#allocation6], 1024
        $region60: #{tpu_custom_call.1} parent=47 // pred_fallthru
          _
        %s297 = sand.u32 %s33, 1
        %s298 = scalar_lea.sflag [#allocation3], %s297
        %s299 = sand.u32 %s33, 1
        %s300 = smul.addr %s299, 8
        %s301 = scalar_lea.vmem [#allocation2], %s300
        %p302 = pneg %p46
        %p303 = pneg %p43
        %p304 = pneg %p67
        %p305 = pneg %p64
        %p306 = pneg %p88
        %p307 = pneg %p85
        %p308 = pneg %p109
        %p309 = pneg %p106
        %p310 = pneg %p130
        %p311 = pneg %p127
        %p312 = pneg %p151
        %p313 = pneg %p148
        %p314 = pneg %p172
        %p315 = pneg %p169
        %p316 = pneg %p198
        %p317 = pneg %p195
        %s318 = sand.u32 %s185, 1
        %s319 = scalar_lea.sflag [#allocation4], %s318
        %s320 = sand.u32 %s185, 1
        %s321 = smul.addr %s320, 8
        %s322 = scalar_lea.vmem [#allocation8], %s321
        %v324 = vld [vmem:[%s284] sm:$0xff]
        %v325 = vld [vmem:[%s1] sm:$0x1]
        %v326 = vld [vmem:[%s2] sm:$0x1]
        %327 = vadd.xlane.f32.xlu0 %v324
        %v328 = vpop.xlane.xlu0 %327
        %v329 = vmul.f32 %v328, 0.03125
        %v330 = vsub.f32 %v324, %v329
        %v331 = vmul.f32 %v330, %v330
        %332 = vadd.xlane.f32.xlu0 %v331
        %v333 = vpop.xlane.xlu0 %332
        %v334 = vmul.f32 %v329, %v329
        %v335 = vmul.f32 %v334, 96.0
        %v336 = vsub.f32 %v333, %v335
        %v337 = vmul.f32 %v336, 0.03125
        %v338 = vmax.f32 %v337, 0.0
        %v339 = vadd.f32 %v338, 1e-05
        %v340 = vrsqrt.pop %v339
        %v341 = vmul.f32 %v330, %v340
        %v343 = vlaneseq
        %v344 = vshrl.u32 %v343, 7
        %v345 = vsub.s32 0, %v344
        %v346 = vrot.slane %v325, %v345
        %v348 = vmul.f32 %v341, %v346
        %v350 = vlaneseq
        %v351 = vshrl.u32 %v350, 7
        %v352 = vsub.s32 0, %v351
        %v353 = vrot.slane %v326, %v352
        %v355 = vadd.f32 %v348, %v353
        %v356 = vpack.c.bf16 %v355, %v355
        %v357 = vld [vmem:[#allocation5] sm:$0xf]
        %v358 = vld [vmem:[#allocation5 + $0x4] sm:$0xf]
        %v359 = vld [vmem:[#allocation5 + $0x8] sm:$0xf]
        %v360 = vld [vmem:[#allocation5 + $0xc] sm:$0xf]
        %v361 = vld [vmem:[#allocation5 + $0x10] sm:$0xf]
        %v362 = vld [vmem:[#allocation5 + $0x14] sm:$0xf]
        %v363 = vld [vmem:[#allocation5 + $0x18] sm:$0xf]
        %v364 = vld [vmem:[#allocation5 + $0x1c] sm:$0xf]
        %v365 = vld [vmem:[#allocation5 + $0x20] sm:$0xf]
        %v366 = vld [vmem:[#allocation5 + $0x24] sm:$0xf]
        %v367 = vld [vmem:[#allocation5 + $0x28] sm:$0xf]
        %v368 = vld [vmem:[#allocation5 + $0x2c] sm:$0xf]
        %v369 = vld [vmem:[#allocation5 + $0x30] sm:$0xf]
        %v370 = vld [vmem:[#allocation5 + $0x34] sm:$0xf]
        %v371 = vld [vmem:[#allocation5 + $0x38] sm:$0xf]
        %v372 = vld [vmem:[#allocation5 + $0x3c] sm:$0xf]
        %v373 = vld [vmem:[%s4] sm:$0x1]
        %v375 = vlaneseq
        %v376 = vshrl.u32 %v375, 7
        %v377 = vsub.s32 0, %v376
        %v378 = vrot.slane %v373, %v377
        %v396 = vunpack.c.l.b16 %v357
        %v397 = vunpack.c.l.b16 %v358
        %v398 = vunpack.c.l.b16 %v359
        %v399 = vunpack.c.l.b16 %v360
        %v400 = vunpack.c.l.b16 %v361
        %v401 = vunpack.c.l.b16 %v362
        %v402 = vunpack.c.l.b16 %v363
        %v403 = vunpack.c.l.b16 %v364
        %v404 = vunpack.c.l.b16 %v365
        %v405 = vunpack.c.l.b16 %v366
        %v406 = vunpack.c.l.b16 %v367
        %v407 = vunpack.c.l.b16 %v368
        %v408 = vunpack.c.l.b16 %v369
        %v409 = vunpack.c.l.b16 %v370
        %v410 = vunpack.c.l.b16 %v371
        %v411 = vunpack.c.l.b16 %v372
        %v412 = vpack.c.b16 %v397, %v396
        %v413 = vpack.c.b16 %v399, %v398
        %v414 = vpack.c.b16 %v401, %v400
        %v415 = vpack.c.b16 %v403, %v402
        %v416 = vpack.c.b16 %v405, %v404
        %v417 = vpack.c.b16 %v407, %v406
        %v418 = vpack.c.b16 %v409, %v408
        %v419 = vpack.c.b16 %v411, %v410
        %428 = vmatprep.subr.bf16.mxu0 0
        %429 = vmatpush1.bf16.msra.mxu0 %v412
        %430 = vmatprep.subr.bf16.mxu0 0
        %431 = vmatpush1.bf16.msra.mxu0 %v413
        %432 = vmatprep.subr.bf16.mxu0 0
        %433 = vmatpush1.bf16.msra.mxu0 %v414
        %434 = vmatprep.subr.bf16.mxu0 0
        %435 = vmatpush1.bf16.msra.mxu0 %v415
        %436 = vmatprep.subr.bf16.mxu0 0
        %437 = vmatpush1.bf16.msra.mxu0 %v416
        %438 = vmatprep.subr.bf16.mxu0 0
        %439 = vmatpush1.bf16.msra.mxu0 %v417
        %440 = vmatprep.subr.bf16.mxu0 0
        %441 = vmatpush1.bf16.msra.mxu0 %v418
        %442 = vmatprep.subr.bf16.mxu0 0
        %443 = vmatpush1.bf16.msra.mxu0 %v419
        %444 = vmatprep.subr.bf16.mxu0 0
        %445 = vmatpush1.bf16.msra.mxu0 0
        %446 = vmatprep.subr.bf16.mxu0 0
        %447 = vmatpush1.bf16.msra.mxu0 0
        %448 = vmatprep.subr.bf16.mxu0 0
        %449 = vmatpush1.bf16.msra.mxu0 0
        %450 = vmatprep.subr.bf16.mxu0 0
        %451 = vmatpush1.bf16.msra.mxu0 0
        %452 = vmatprep.subr.bf16.mxu0 0
        %453 = vmatpush1.bf16.msra.mxu0 0
        %454 = vmatprep.subr.bf16.mxu0 0
        %455 = vmatpush1.bf16.msra.mxu0 0
        %456 = vmatprep.subr.bf16.mxu0 0
        %457 = vmatpush1.bf16.msra.mxu0 0
        %458 = vmatprep.subr.bf16.mxu0 0
        %459 = vmatpush1.bf16.msra.mxu0 0
        %460 = vmatprep.mubr.bf16.mxu0 0
        %461 = vmatmul.mubr.bf16.gmra.mrb[0].mxu0 %v356
        %v462 = vpop.f32.mrb[0].mxu0
        %v463 = vadd.f32 %v378, %v462
        %v464 = vpop.f32.mrb[0].mxu0
        %v465 = vpop.f32.mrb[0].mxu0
        %v466 = vpop.f32.mrb[0].mxu0
        %467 = vdwg.mxu0
        %v468 = vmax.f32 %v463, 0.0
        %v469 = vpack.c.bf16 %v468, %v468
        %v470 = vld [vmem:[#allocation7] sm:$0xf]
        %v471 = vld [vmem:[#allocation7 + $0x4] sm:$0xf]
        %v472 = vld [vmem:[#allocation7 + $0x8] sm:$0xf]
        %v473 = vld [vmem:[#allocation7 + $0xc] sm:$0xf]
        %v474 = vld [vmem:[#allocation7 + $0x10] sm:$0xf]
        %v475 = vld [vmem:[#allocation7 + $0x14] sm:$0xf]
        %v476 = vld [vmem:[#allocation7 + $0x18] sm:$0xf]
        %v477 = vld [vmem:[#allocation7 + $0x1c] sm:$0xf]
        %v478 = vld [vmem:[#allocation7 + $0x20] sm:$0xf]
        %v479 = vld [vmem:[#allocation7 + $0x24] sm:$0xf]
        %v480 = vld [vmem:[#allocation7 + $0x28] sm:$0xf]
        %v481 = vld [vmem:[#allocation7 + $0x2c] sm:$0xf]
        %v482 = vld [vmem:[#allocation7 + $0x30] sm:$0xf]
        %v483 = vld [vmem:[#allocation7 + $0x34] sm:$0xf]
        %v484 = vld [vmem:[#allocation7 + $0x38] sm:$0xf]
        %v485 = vld [vmem:[#allocation7 + $0x3c] sm:$0xf]
        %v486 = vld [vmem:[%s6] sm:$0x1]
        %v488 = vlaneseq
        %v489 = vshrl.u32 %v488, 7
        %v490 = vsub.s32 0, %v489
        %v491 = vrot.slane %v486, %v490
        %v509 = vunpack.c.l.b16 %v470
        %v510 = vunpack.c.l.b16 %v471
        %v511 = vunpack.c.l.b16 %v472
        %v512 = vunpack.c.l.b16 %v473
        %v513 = vunpack.c.l.b16 %v474
        %v514 = vunpack.c.l.b16 %v475
        %v515 = vunpack.c.l.b16 %v476
        %v516 = vunpack.c.l.b16 %v477
        %v517 = vunpack.c.l.b16 %v478
        %v518 = vunpack.c.l.b16 %v479
        %v519 = vunpack.c.l.b16 %v480
        %v520 = vunpack.c.l.b16 %v481
        %v521 = vunpack.c.l.b16 %v482
        %v522 = vunpack.c.l.b16 %v483
        %v523 = vunpack.c.l.b16 %v484
        %v524 = vunpack.c.l.b16 %v485
        %v525 = vpack.c.b16 %v510, %v509
        %v526 = vpack.c.b16 %v512, %v511
        %v527 = vpack.c.b16 %v514, %v513
        %v528 = vpack.c.b16 %v516, %v515
        %v529 = vpack.c.b16 %v518, %v517
        %v530 = vpack.c.b16 %v520, %v519
        %v531 = vpack.c.b16 %v522, %v521
        %v532 = vpack.c.b16 %v524, %v523
        %541 = vmatprep.subr.bf16.mxu0 0
        %542 = vmatpush1.bf16.msra.mxu0 %v525
        %543 = vmatprep.subr.bf16.mxu0 0
        %544 = vmatpush1.bf16.msra.mxu0 %v526
        %545 = vmatprep.subr.bf16.mxu0 0
        %546 = vmatpush1.bf16.msra.mxu0 %v527
        %547 = vmatprep.subr.bf16.mxu0 0
        %548 = vmatpush1.bf16.msra.mxu0 %v528
        %549 = vmatprep.subr.bf16.mxu0 0
        %550 = vmatpush1.bf16.msra.mxu0 %v529
        %551 = vmatprep.subr.bf16.mxu0 0
        %552 = vmatpush1.bf16.msra.mxu0 %v530
        %553 = vmatprep.subr.bf16.mxu0 0
        %554 = vmatpush1.bf16.msra.mxu0 %v531
        %555 = vmatprep.subr.bf16.mxu0 0
        %556 = vmatpush1.bf16.msra.mxu0 %v532
        %557 = vmatprep.subr.bf16.mxu0 0
        %558 = vmatpush1.bf16.msra.mxu0 0
        %559 = vmatprep.subr.bf16.mxu0 0
        %560 = vmatpush1.bf16.msra.mxu0 0
        %561 = vmatprep.subr.bf16.mxu0 0
        %562 = vmatpush1.bf16.msra.mxu0 0
        %563 = vmatprep.subr.bf16.mxu0 0
        %564 = vmatpush1.bf16.msra.mxu0 0
        %565 = vmatprep.subr.bf16.mxu0 0
        %566 = vmatpush1.bf16.msra.mxu0 0
        %567 = vmatprep.subr.bf16.mxu0 0
        %568 = vmatpush1.bf16.msra.mxu0 0
        %569 = vmatprep.subr.bf16.mxu0 0
        %570 = vmatpush1.bf16.msra.mxu0 0
        %571 = vmatprep.subr.bf16.mxu0 0
        %572 = vmatpush1.bf16.msra.mxu0 0
        %573 = vmatprep.mubr.bf16.mxu0 0
        %574 = vmatmul.mubr.bf16.gmra.mrb[0].mxu0 %v469
        %v575 = vpop.f32.mrb[0].mxu0
        %v576 = vadd.f32 %v491, %v575
        %v577 = vpop.f32.mrb[0].mxu0
        %v578 = vpop.f32.mrb[0].mxu0
        %v579 = vpop.f32.mrb[0].mxu0
        %580 = vdwg.mxu0
        %581 = vst [vmem:[%s322] sm:$0xff] %v576
        %s582 = sand.u32 %s185, 1
        %s583 = scalar_lea.sflag [#allocation4], %s582
        %s584 = sand.u32 %s185, 1
        %s585 = smul.addr %s584, 8
        %s586 = scalar_lea.vmem [#allocation8], %s585
        // Predicated region
        $region61: #{tpu_custom_call.1} parent=47 // pred_check
          %p587 = pneg %p195
        $region62: #{tpu_custom_call.1} parent=47 // pred_check_branch
          %589 = sbr.rel (%p587) target = $region64
        $region63: #{tpu_custom_call.1} parent=47 // pred_region
          %s591 = ssub.s32 128, 128
          %592 = vsyncadd %s583, %s591
          %s593 = smul.addr %s25, 128
          %s594 = scalar_lea.hbm %s7, %s593
          %s596 = sshll.u32 %s586, 4
          %s597 = int_to_ptr.vmem [resolvable:$true] %s596
          %599 = dma.vmem_to_hbm [thread:$0]  %s597, 128, %s594, %s583
        $region64: #{tpu_custom_call.1} parent=47 // pred_fallthru
          _
      $region48: #{tpu_custom_call.1} parent=5 // pred_fallthru
        _
      %p600 = scmp.le.s32.totalorder 2, %s20
      // Predicated region
      $region65: #{tpu_custom_call.1} parent=5 // pred_check
        %p601 = pneg %p600
      $region66: #{tpu_custom_call.1} parent=5 // pred_check_branch
        %603 = sbr.rel (%p601) target = $region68
      $region67: #{tpu_custom_call.1} parent=5 // pred_region
        %s604 = ssub.s32 %s20, 2
        // Predicated region
        $region69: #{tpu_custom_call.1} parent=67 // pred_check
          %p605 = pneg %p201
        $region70: #{tpu_custom_call.1} parent=67 // pred_check_branch
          %607 = sbr.rel (%p605) target = $region72
        $region71: #{tpu_custom_call.1} parent=67 // pred_region
          %s608 = sand.u32 %s186, 1
          %s609 = scalar_lea.sflag [#allocation4], %s608
          %s610 = sand.u32 %s186, 1
          %s611 = smul.addr %s610, 8
          %s612 = scalar_lea.vmem [#allocation8], %s611
          %613 = dma.done %s609, 128
        $region72: #{tpu_custom_call.1} parent=67 // pred_fallthru
          _
      $region68: #{tpu_custom_call.1} parent=5 // pred_fallthru
        _
    $region6: #{tpu_custom_call.1} parent=1 // loop_footer
      %s24 = sadd.s32 1, %s20
    $region7: #{tpu_custom_call.1} parent=1 // loop_footer_branch
      %19 = sbr.rel target = $region3
    $region8: #{tpu_custom_call.1} parent=1 // loop_exit
      _
    %614 = vsyncpa [#allocation3], 1
    %s615 = scalar_lea.sflag [#allocation3], 1
    %616 = vsyncpa %s615, 1
    %617 = vsyncpa [#allocation6], 1
    %618 = vsyncpa [#allocation4], 1
    %s619 = scalar_lea.sflag [#allocation4], 1
    %620 = vsyncpa %s619, 1

// kernel: tpu_custom_call.1
$region0: #{tpu_custom_call.1}
  #allocation0 [shape = 'u32[]', space=smem, size = 0x4, offset = 0x4, fixed_abs, tag = 'smem constant byte address 0x4 - core index']
  #allocation1 [shape = 'u32[144,128]{1,0:T(1,128)}', space=vmem, size = 0x12000, scoped, tag = 'internal scratch']
  %s0 = inlined_call_operand.hbm [shape: f32[16,128], index: 0, kind: input, shape index: {}]
  %s1 = inlined_call_operand.vmem [shape: f32[1,128], index: 1, kind: input, shape index: {}]
  %s2 = inlined_call_operand.vmem [shape: f32[1,128], index: 2, kind: input, shape index: {}]
  %s3 = inlined_call_operand.hbm [shape: bf16[128,128], index: 3, kind: input, shape index: {}]
  %s4 = inlined_call_operand.vmem [shape: f32[1,128], index: 4, kind: input, shape index: {}]
  %s5 = inlined_call_operand.hbm [shape: bf16[128,128], index: 5, kind: input, shape index: {}]
  %s6 = inlined_call_operand.vmem [shape: f32[1,128], index: 6, kind: input, shape index: {}]
  %s7 = inlined_call_operand.hbm [shape: f32[16,128], index: 7, kind: output, shape index: {}]
  %s8 = sld [smem:[#allocation0]]
  $region73: #{tpu_custom_call.1} parent=0
    _
  %s10 = ssub.s32 1, %s8
  %s11 = scalar_select 0, %s10, %s8
  $region1: #{tpu_custom_call.1} parent=0
    #allocation2 [shape = 'u8[8192]{0}', space=vmem, size = 0x2000, scoped, tag = 'input window, operand 0']
    #allocation3 [shape = 's32[2]{0}', space=sflag, size = 0x8, scoped, tag = 'scoped memory for tpu_custom_call.1']
    #allocation4 [shape = 's32[2]{0}', space=sflag, size = 0x8, scoped, tag = 'scoped memory for tpu_custom_call.1']
    #allocation5 [shape = 'u8[32768]{0}', space=vmem, size = 0x8000, scoped, tag = 'input window, operand 3, single buffered']
    #allocation6 [shape = 's32[1]{0}', space=sflag, size = 0x4, scoped, tag = 'scoped memory for tpu_custom_call.1']
    #allocation7 [shape = 'u8[32768]{0}', space=vmem, size = 0x8000, scoped, tag = 'input window, operand 5, single buffered']
    #allocation8 [shape = 'u8[8192]{0}', space=vmem, size = 0x2000, scoped, tag = 'output window, operand 0']
    %12 = vsyncpa [#allocation3], 0
    %s13 = scalar_lea.sflag [#allocation3], 1
    %14 = vsyncpa %s13, 0
    %15 = vsyncpa [#allocation6], 0
    %16 = vsyncpa [#allocation4], 0
    %s17 = scalar_lea.sflag [#allocation4], 1
    %18 = vsyncpa %s17, 0
    loop: start=0, step=1, limit=4
    $region2: #{tpu_custom_call.1} parent=1 // loop_pre_header
      _
    $region3: #{tpu_custom_call.1} parent=1 // loop_header
      %s20 = sphi 0, %s24
      %p21 = scmp.ge.s32.totalorder %s20, 4
      %s30 = sphi 0, %s32
      %s33 = sphi 0, %s30
      %s34 = sphi 0, %s33
      %s50 = sphi 0, %s34
      %s54 = sphi 0, %s54
      %s56 = sphi 0, %s54
      %s57 = sphi 0, %s56
      %s71 = sphi 0, %s57
      %s75 = sphi 0, %s75
      %s77 = sphi 0, %s75
      %s78 = sphi 0, %s77
      %s92 = sphi 0, %s78
      %s96 = sphi 0, %s96
      %s98 = sphi 0, %s96
      %s99 = sphi 0, %s98
      %s113 = sphi 0, %s99
      %s117 = sphi 0, %s117
      %s119 = sphi 0, %s117
      %s120 = sphi 0, %s119
      %s134 = sphi 0, %s120
      %s138 = sphi 0, %s138
      %s140 = sphi 0, %s138
      %s141 = sphi 0, %s140
      %s155 = sphi 0, %s141
      %s159 = sphi 0, %s159
      %s161 = sphi 0, %s159
      %s162 = sphi 0, %s161
      %s176 = sphi 0, %s162
      %s182 = sphi 0, %s184
      %s185 = sphi 0, %s182
      %s186 = sphi 0, %s185
      %s202 = sphi 0, %s186
    $region4: #{tpu_custom_call.1} parent=1 // loop_header_branch
      %23 = sbr.rel (%p21) target = $region8
    $region5: #{tpu_custom_call.1} parent=1 // loop_body
      %s25 = ssub.s32 %s20, 1
      %s26 = ssub.s32 %s20, 2
      %s27 = sadd.s32 %s20, 1
      %s28 = ssub.s32 %s20, %s27
      %p29 = scmp.eq.s32.totalorder %s28, 0
      %s31 = sadd.s32 %s30, 1
      %s32 = scalar_select %p29, %s30, %s31
      %p35 = pneg %p29
      %p36 = scmp.eq.s32.totalorder %s20, 1
      %p37 = por %p35, %p36
      %p38 = scmp.ne.s32.totalorder %s30, %s33
      %p39 = scmp.eq.s32.totalorder %s20, 0
      %p40 = por %p38, %p39
      %p41 = scmp.ne.s32.totalorder %s30, %s33
      %p42 = scmp.eq.s32.totalorder %s25, 1
      %p43 = por %p41, %p42
      %p44 = scmp.ne.s32.totalorder %s33, %s34
      %p45 = scmp.eq.s32.totalorder %s25, 0
      %p46 = por %p44, %p45
      %p47 = scmp.ne.s32.totalorder %s33, %s34
      %p48 = scmp.eq.s32.totalorder %s26, 1
      %p49 = por %p47, %p48
      %p51 = scmp.ne.s32.totalorder %s34, %s50
      %p52 = scmp.eq.s32.totalorder %s26, 0
      %p53 = por %p51, %p52
      %s55 = sadd.s32 %s54, 1
      %p58 = scmp.eq.s32.totalorder %s20, 1
      %p59 = scmp.ne.s32.totalorder %s54, %s56
      %p60 = scmp.eq.s32.totalorder %s20, 0
      %p61 = por %p59, %p60
      %p62 = scmp.ne.s32.totalorder %s54, %s56
      %p63 = scmp.eq.s32.totalorder %s25, 1
      %p64 = por %p62, %p63
      %p65 = scmp.ne.s32.totalorder %s56, %s57
      %p66 = scmp.eq.s32.totalorder %s25, 0
      %p67 = por %p65, %p66
      %p68 = scmp.ne.s32.totalorder %s56, %s57
      %p69 = scmp.eq.s32.totalorder %s26, 1
      %p70 = por %p68, %p69
      %p72 = scmp.ne.s32.totalorder %s57, %s71
      %p73 = scmp.eq.s32.totalorder %s26, 0
      %p74 = por %p72, %p73
      %s76 = sadd.s32 %s75, 1
      %p79 = scmp.eq.s32.totalorder %s20, 1
      %p80 = scmp.ne.s32.totalorder %s75, %s77
      %p81 = scmp.eq.s32.totalorder %s20, 0
      %p82 = por %p80, %p81
      %p83 = scmp.ne.s32.totalorder %s75, %s77
      %p84 = scmp.eq.s32.totalorder %s25, 1
      %p85 = por %p83, %p84
      %p86 = scmp.ne.s32.totalorder %s77, %s78
      %p87 = scmp.eq.s32.totalorder %s25, 0
      %p88 = por %p86, %p87
      %p89 = scmp.ne.s32.totalorder %s77, %s78
      %p90 = scmp.eq.s32.totalorder %s26, 1
      %p91 = por %p89, %p90
      %p93 = scmp.ne.s32.totalorder %s78, %s92
      %p94 = scmp.eq.s32.totalorder %s26, 0
      %p95 = por %p93, %p94
      %s97 = sadd.s32 %s96, 1
      %p100 = scmp.eq.s32.totalorder %s20, 1
      %p101 = scmp.ne.s32.totalorder %s96, %s98
      %p102 = scmp.eq.s32.totalorder %s20, 0
      %p103 = por %p101, %p102
      %p104 = scmp.ne.s32.totalorder %s96, %s98
      %p105 = scmp.eq.s32.totalorder %s25, 1
      %p106 = por %p104, %p105
      %p107 = scmp.ne.s32.totalorder %s98, %s99
      %p108 = scmp.eq.s32.totalorder %s25, 0
      %p109 = por %p107, %p108
      %p110 = scmp.ne.s32.totalorder %s98, %s99
      %p111 = scmp.eq.s32.totalorder %s26, 1
      %p112 = por %p110, %p111
      %p114 = scmp.ne.s32.totalorder %s99, %s113
      %p115 = scmp.eq.s32.totalorder %s26, 0
      %p116 = por %p114, %p115
      %s118 = sadd.s32 %s117, 1
      %p121 = scmp.eq.s32.totalorder %s20, 1
      %p122 = scmp.ne.s32.totalorder %s117, %s119
      %p123 = scmp.eq.s32.totalorder %s20, 0
      %p124 = por %p122, %p123
      %p125 = scmp.ne.s32.totalorder %s117, %s119
      %p126 = scmp.eq.s32.totalorder %s25, 1
      %p127 = por %p125, %p126
      %p128 = scmp.ne.s32.totalorder %s119, %s120
      %p129 = scmp.eq.s32.totalorder %s25, 0
      %p130 = por %p128, %p129
      %p131 = scmp.ne.s32.totalorder %s119, %s120
      %p132 = scmp.eq.s32.totalorder %s26, 1
      %p133 = por %p131, %p132
      %p135 = scmp.ne.s32.totalorder %s120, %s134
      %p136 = scmp.eq.s32.totalorder %s26, 0
      %p137 = por %p135, %p136
      %s139 = sadd.s32 %s138, 1
      %p142 = scmp.eq.s32.totalorder %s20, 1
      %p143 = scmp.ne.s32.totalorder %s138, %s140
      %p144 = scmp.eq.s32.totalorder %s20, 0
      %p145 = por %p143, %p144
      %p146 = scmp.ne.s32.totalorder %s138, %s140
      %p147 = scmp.eq.s32.totalorder %s25, 1
      %p148 = por %p146, %p147
      %p149 = scmp.ne.s32.totalorder %s140, %s141
      %p150 = scmp.eq.s32.totalorder %s25, 0
      %p151 = por %p149, %p150
      %p152 = scmp.ne.s32.totalorder %s140, %s141
      %p153 = scmp.eq.s32.totalorder %s26, 1
      %p154 = por %p152, %p153
      %p156 = scmp.ne.s32.totalorder %s141, %s155
      %p157 = scmp.eq.s32.totalorder %s26, 0
      %p158 = por %p156, %p157
      %s160 = sadd.s32 %s159, 1
      %p163 = scmp.eq.s32.totalorder %s20, 1
      %p164 = scmp.ne.s32.totalorder %s159, %s161
      %p165 = scmp.eq.s32.totalorder %s20, 0
      %p166 = por %p164, %p165
      %p167 = scmp.ne.s32.totalorder %s159, %s161
      %p168 = scmp.eq.s32.totalorder %s25, 1
      %p169 = por %p167, %p168
      %p170 = scmp.ne.s32.totalorder %s161, %s162
      %p171 = scmp.eq.s32.totalorder %s25, 0
      %p172 = por %p170, %p171
      %p173 = scmp.ne.s32.totalorder %s161, %s162
      %p174 = scmp.eq.s32.totalorder %s26, 1
      %p175 = por %p173, %p174
      %p177 = scmp.ne.s32.totalorder %s162, %s176
      %p178 = scmp.eq.s32.totalorder %s26, 0
      %p179 = por %p177, %p178
      %s180 = ssub.s32 %s20, %s27
      %p181 = scmp.eq.s32.totalorder %s180, 0
      %s183 = sadd.s32 %s182, 1
      %s184 = scalar_select %p181, %s182, %s183
      %p187 = pneg %p181
      %p188 = scmp.eq.s32.totalorder %s20, 1
      %p189 = por %p187, %p188
      %p190 = scmp.ne.s32.totalorder %s182, %s185
      %p191 = scmp.eq.s32.totalorder %s20, 0
      %p192 = por %p190, %p191
      %p193 = scmp.ne.s32.totalorder %s182, %s185
      %p194 = scmp.eq.s32.totalorder %s25, 1
      %p195 = por %p193, %p194
      %p196 = scmp.ne.s32.totalorder %s185, %s186
      %p197 = scmp.eq.s32.totalorder %s25, 0
      %p198 = por %p196, %p197
      %p199 = scmp.ne.s32.totalorder %s185, %s186
      %p200 = scmp.eq.s32.totalorder %s26, 1
      %p201 = por %p199, %p200
      %p203 = scmp.ne.s32.totalorder %s186, %s202
      %p204 = scmp.eq.s32.totalorder %s26, 0
      %p205 = por %p203, %p204
      %p206 = scmp.le.s32.totalorder 1, %s20
      %p207 = scmp.lt.s32.totalorder %s20, 3
      %p208 = pnand %p206, %p207
      %p209 = pneg %p208
      // Predicated region
      $region9: #{tpu_custom_call.1} parent=5 // pred_check
        _
      $region10: #{tpu_custom_call.1} parent=5 // pred_check_branch
        %211 = sbr.rel (%p208) target = $region12
      $region11: #{tpu_custom_call.1} parent=5 // pred_region
        %s212 = ssub.s32 %s20, 1
        // Predicated region
        $region13: #{tpu_custom_call.1} parent=11 // pred_check
          %p213 = pneg %p67
        $region14: #{tpu_custom_call.1} parent=11 // pred_check_branch
          %215 = sbr.rel (%p213) target = $region16
        $region15: #{tpu_custom_call.1} parent=11 // pred_region
          _
        $region16: #{tpu_custom_call.1} parent=11 // pred_fallthru
          _
        // Predicated region
        $region17: #{tpu_custom_call.1} parent=11 // pred_check
          %p216 = pneg %p88
        $region18: #{tpu_custom_call.1} parent=11 // pred_check_branch
          %218 = sbr.rel (%p216) target = $region20
        $region19: #{tpu_custom_call.1} parent=11 // pred_region
          _
        $region20: #{tpu_custom_call.1} parent=11 // pred_fallthru
          _
        // Predicated region
        $region21: #{tpu_custom_call.1} parent=11 // pred_check
          %p219 = pneg %p109
        $region22: #{tpu_custom_call.1} parent=11 // pred_check_branch
          %221 = sbr.rel (%p219) target = $region24
        $region23: #{tpu_custom_call.1} parent=11 // pred_region
          %s223 = ssub.s32 1024, 1024
          %224 = vsyncadd [#allocation6], %s223
          %s225 = sshll.u32 [#allocation5], 4
          %s226 = int_to_ptr.vmem [resolvable:$true] %s225
          %231 = dma.hbm_to_vmem [thread:$0]  %s3, 1024, %s226, [#allocation6], 64, 64, 4
        $region24: #{tpu_custom_call.1} parent=11 // pred_fallthru
          _
        // Predicated region
        $region25: #{tpu_custom_call.1} parent=11 // pred_check
          %p232 = pneg %p130
        $region26: #{tpu_custom_call.1} parent=11 // pred_check_branch
          %234 = sbr.rel (%p232) target = $region28
        $region27: #{tpu_custom_call.1} parent=11 // pred_region
          _
        $region28: #{tpu_custom_call.1} parent=11 // pred_fallthru
          _
        // Predicated region
        $region29: #{tpu_custom_call.1} parent=11 // pred_check
          %p235 = pneg %p151
        $region30: #{tpu_custom_call.1} parent=11 // pred_check_branch
          %237 = sbr.rel (%p235) target = $region32
        $region31: #{tpu_custom_call.1} parent=11 // pred_region
          %s239 = ssub.s32 1024, 1024
          %240 = vsyncadd [#allocation6], %s239
          %s241 = sshll.u32 [#allocation7], 4
          %s242 = int_to_ptr.vmem [resolvable:$true] %s241
          %247 = dma.hbm_to_vmem [thread:$0]  %s5, 1024, %s242, [#allocation6], 64, 64, 4
        $region32: #{tpu_custom_call.1} parent=11 // pred_fallthru
          _
        // Predicated region
        $region33: #{tpu_custom_call.1} parent=11 // pred_check
          %p248 = pneg %p172
        $region34: #{tpu_custom_call.1} parent=11 // pred_check_branch
          %250 = sbr.rel (%p248) target = $region36
        $region35: #{tpu_custom_call.1} parent=11 // pred_region
          _
        $region36: #{tpu_custom_call.1} parent=11 // pred_fallthru
          _
      $region12: #{tpu_custom_call.1} parent=5 // pred_fallthru
        _
      %p251 = scmp.lt.s32.totalorder %s20, 2
      // Predicated region
      $region37: #{tpu_custom_call.1} parent=5 // pred_check
        %p252 = pneg %p251
      $region38: #{tpu_custom_call.1} parent=5 // pred_check_branch
        %254 = sbr.rel (%p252) target = $region40
      $region39: #{tpu_custom_call.1} parent=5 // pred_region
        // Predicated region
        $region41: #{tpu_custom_call.1} parent=39 // pred_check
          %p255 = pneg %p40
        $region42: #{tpu_custom_call.1} parent=39 // pred_check_branch
          %257 = sbr.rel (%p255) target = $region44
        $region43: #{tpu_custom_call.1} parent=39 // pred_region
          %s258 = sand.u32 %s30, 1
          %s259 = scalar_lea.sflag [#allocation3], %s258
          %s260 = sand.u32 %s30, 1
          %s261 = smul.addr %s260, 8
          %s262 = scalar_lea.vmem [#allocation2], %s261
          %s264 = ssub.s32 128, 128
          %265 = vsyncadd %s259, %s264
          %s266 = smul.addr %s20, 128
          %s267 = scalar_lea.hbm %s0, %s266
          %s269 = sshll.u32 %s262, 4
          %s270 = int_to_ptr.vmem [resolvable:$true] %s269
          %272 = dma.hbm_to_vmem [thread:$0]  %s267, 128, %s270, %s259
        $region44: #{tpu_custom_call.1} parent=39 // pred_fallthru
          _
      $region40: #{tpu_custom_call.1} parent=5 // pred_fallthru
        _
      %p273 = scmp.le.s32.totalorder 1, %s20
      %p274 = scmp.lt.s32.totalorder %s20, 3
      %p275 = pnand %p273, %p274
      %p276 = pneg %p275
      // Predicated region
      $region45: #{tpu_custom_call.1} parent=5 // pred_check
        _
      $region46: #{tpu_custom_call.1} parent=5 // pred_check_branch
        %278 = sbr.rel (%p275) target = $region48
      $region47: #{tpu_custom_call.1} parent=5 // pred_region
        %s279 = ssub.s32 %s20, 1
        %s280 = sand.u32 %s33, 1
        %s281 = scalar_lea.sflag [#allocation3], %s280
        %s282 = sand.u32 %s33, 1
        %s283 = smul.addr %s282, 8
        %s284 = scalar_lea.vmem [#allocation2], %s283
        // Predicated region
        $region49: #{tpu_custom_call.1} parent=47 // pred_check
          %p285 = pneg %p46
        $region50: #{tpu_custom_call.1} parent=47 // pred_check_branch
          %287 = sbr.rel (%p285) target = $region52
        $region51: #{tpu_custom_call.1} parent=47 // pred_region
          %288 = dma.done %s281, 128
        $region52: #{tpu_custom_call.1} parent=47 // pred_fallthru
          _
        // Predicated region
        $region53: #{tpu_custom_call.1} parent=47 // pred_check
          %p289 = pneg %p109
        $region54: #{tpu_custom_call.1} parent=47 // pred_check_branch
          %291 = sbr.rel (%p289) target = $region56
        $region55: #{tpu_custom_call.1} parent=47 // pred_region
          %292 = dma.done [#allocation6], 1024
        $region56: #{tpu_custom_call.1} parent=47 // pred_fallthru
          _
        // Predicated region
        $region57: #{tpu_custom_call.1} parent=47 // pred_check
          %p293 = pneg %p151
        $region58: #{tpu_custom_call.1} parent=47 // pred_check_branch
          %295 = sbr.rel (%p293) target = $region60
        $region59: #{tpu_custom_call.1} parent=47 // pred_region
          %296 = dma.done [#allocation6], 1024
        $region60: #{tpu_custom_call.1} parent=47 // pred_fallthru
          _
        %s297 = sand.u32 %s33, 1
        %s298 = scalar_lea.sflag [#allocation3], %s297
        %s299 = sand.u32 %s33, 1
        %s300 = smul.addr %s299, 8
        %s301 = scalar_lea.vmem [#allocation2], %s300
        %p302 = pneg %p46
        %p303 = pneg %p43
        %p304 = pneg %p67
        %p305 = pneg %p64
        %p306 = pneg %p88
        %p307 = pneg %p85
        %p308 = pneg %p109
        %p309 = pneg %p106
        %p310 = pneg %p130
        %p311 = pneg %p127
        %p312 = pneg %p151
        %p313 = pneg %p148
        %p314 = pneg %p172
        %p315 = pneg %p169
        %p316 = pneg %p198
        %p317 = pneg %p195
        %s318 = sand.u32 %s185, 1
        %s319 = scalar_lea.sflag [#allocation4], %s318
        %s320 = sand.u32 %s185, 1
        %s321 = smul.addr %s320, 8
        %s322 = scalar_lea.vmem [#allocation8], %s321
        %v324 = vld [vmem:[%s284] sm:$0xff]
        %v325 = vld [vmem:[%s1] sm:$0x1]
        %v326 = vld [vmem:[%s2] sm:$0x1]
        %327 = vadd.xlane.f32.xlu0 %v324
        %v328 = vpop.xlane.xlu0 %327
        %v329 = vmul.f32 %v328, 0.03125
        %v330 = vsub.f32 %v324, %v329
        %v331 = vmul.f32 %v330, %v330
        %332 = vadd.xlane.f32.xlu0 %v331
        %v333 = vpop.xlane.xlu0 %332
        %v334 = vmul.f32 %v329, %v329
        %v335 = vmul.f32 %v334, 96.0
        %v336 = vsub.f32 %v333, %v335
        %v337 = vmul.f32 %v336, 0.03125
        %v338 = vmax.f32 %v337, 0.0
        %v339 = vadd.f32 %v338, 1e-05
        %v340 = vrsqrt.pop %v339
        %v341 = vmul.f32 %v330, %v340
        %v343 = vlaneseq
        %v344 = vshrl.u32 %v343, 7
        %v345 = vsub.s32 0, %v344
        %v346 = vrot.slane %v325, %v345
        %v348 = vmul.f32 %v341, %v346
        %v350 = vlaneseq
        %v351 = vshrl.u32 %v350, 7
        %v352 = vsub.s32 0, %v351
        %v353 = vrot.slane %v326, %v352
        %v355 = vadd.f32 %v348, %v353
        %v356 = vpack.c.bf16 %v355, %v355
        %v357 = vld [vmem:[#allocation5] sm:$0xf]
        %v358 = vld [vmem:[#allocation5 + $0x4] sm:$0xf]
        %v359 = vld [vmem:[#allocation5 + $0x8] sm:$0xf]
        %v360 = vld [vmem:[#allocation5 + $0xc] sm:$0xf]
        %v361 = vld [vmem:[#allocation5 + $0x10] sm:$0xf]
        %v362 = vld [vmem:[#allocation5 + $0x14] sm:$0xf]
        %v363 = vld [vmem:[#allocation5 + $0x18] sm:$0xf]
        %v364 = vld [vmem:[#allocation5 + $0x1c] sm:$0xf]
        %v365 = vld [vmem:[#allocation5 + $0x20] sm:$0xf]
        %v366 = vld [vmem:[#allocation5 + $0x24] sm:$0xf]
        %v367 = vld [vmem:[#allocation5 + $0x28] sm:$0xf]
        %v368 = vld [vmem:[#allocation5 + $0x2c] sm:$0xf]
        %v369 = vld [vmem:[#allocation5 + $0x30] sm:$0xf]
        %v370 = vld [vmem:[#allocation5 + $0x34] sm:$0xf]
        %v371 = vld [vmem:[#allocation5 + $0x38] sm:$0xf]
        %v372 = vld [vmem:[#allocation5 + $0x3c] sm:$0xf]
        %v373 = vld [vmem:[%s4] sm:$0x1]
        %v375 = vlaneseq
        %v376 = vshrl.u32 %v375, 7
        %v377 = vsub.s32 0, %v376
        %v378 = vrot.slane %v373, %v377
        %v396 = vunpack.c.l.b16 %v357
        %v397 = vunpack.c.l.b16 %v358
        %v398 = vunpack.c.l.b16 %v359
        %v399 = vunpack.c.l.b16 %v360
        %v400 = vunpack.c.l.b16 %v361
        %v401 = vunpack.c.l.b16 %v362
        %v402 = vunpack.c.l.b16 %v363
        %v403 = vunpack.c.l.b16 %v364
        %v404 = vunpack.c.l.b16 %v365
        %v405 = vunpack.c.l.b16 %v366
        %v406 = vunpack.c.l.b16 %v367
        %v407 = vunpack.c.l.b16 %v368
        %v408 = vunpack.c.l.b16 %v369
        %v409 = vunpack.c.l.b16 %v370
        %v410 = vunpack.c.l.b16 %v371
        %v411 = vunpack.c.l.b16 %v372
        %v412 = vpack.c.b16 %v397, %v396
        %v413 = vpack.c.b16 %v399, %v398
        %v414 = vpack.c.b16 %v401, %v400
        %v415 = vpack.c.b16 %v403, %v402
        %v416 = vpack.c.b16 %v405, %v404
        %v417 = vpack.c.b16 %v407, %v406
        %v418 = vpack.c.b16 %v409, %v408
        %v419 = vpack.c.b16 %v411, %v410
        %428 = vmatprep.subr.bf16.mxu0 0
        %429 = vmatpush1.bf16.msra.mxu0 %v412
        %430 = vmatprep.subr.bf16.mxu0 0
        %431 = vmatpush1.bf16.msra.mxu0 %v413
        %432 = vmatprep.subr.bf16.mxu0 0
        %433 = vmatpush1.bf16.msra.mxu0 %v414
        %434 = vmatprep.subr.bf16.mxu0 0
        %435 = vmatpush1.bf16.msra.mxu0 %v415
        %436 = vmatprep.subr.bf16.mxu0 0
        %437 = vmatpush1.bf16.msra.mxu0 %v416
        %438 = vmatprep.subr.bf16.mxu0 0
        %439 = vmatpush1.bf16.msra.mxu0 %v417
        %440 = vmatprep.subr.bf16.mxu0 0
        %441 = vmatpush1.bf16.msra.mxu0 %v418
        %442 = vmatprep.subr.bf16.mxu0 0
        %443 = vmatpush1.bf16.msra.mxu0 %v419
        %444 = vmatprep.subr.bf16.mxu0 0
        %445 = vmatpush1.bf16.msra.mxu0 0
        %446 = vmatprep.subr.bf16.mxu0 0
        %447 = vmatpush1.bf16.msra.mxu0 0
        %448 = vmatprep.subr.bf16.mxu0 0
        %449 = vmatpush1.bf16.msra.mxu0 0
        %450 = vmatprep.subr.bf16.mxu0 0
        %451 = vmatpush1.bf16.msra.mxu0 0
        %452 = vmatprep.subr.bf16.mxu0 0
        %453 = vmatpush1.bf16.msra.mxu0 0
        %454 = vmatprep.subr.bf16.mxu0 0
        %455 = vmatpush1.bf16.msra.mxu0 0
        %456 = vmatprep.subr.bf16.mxu0 0
        %457 = vmatpush1.bf16.msra.mxu0 0
        %458 = vmatprep.subr.bf16.mxu0 0
        %459 = vmatpush1.bf16.msra.mxu0 0
        %460 = vmatprep.mubr.bf16.mxu0 0
        %461 = vmatmul.mubr.bf16.gmra.mrb[0].mxu0 %v356
        %v462 = vpop.f32.mrb[0].mxu0
        %v463 = vadd.f32 %v378, %v462
        %v464 = vpop.f32.mrb[0].mxu0
        %v465 = vpop.f32.mrb[0].mxu0
        %v466 = vpop.f32.mrb[0].mxu0
        %467 = vdwg.mxu0
        %v468 = vmax.f32 %v463, 0.0
        %v469 = vpack.c.bf16 %v468, %v468
        %v470 = vld [vmem:[#allocation7] sm:$0xf]
        %v471 = vld [vmem:[#allocation7 + $0x4] sm:$0xf]
        %v472 = vld [vmem:[#allocation7 + $0x8] sm:$0xf]
        %v473 = vld [vmem:[#allocation7 + $0xc] sm:$0xf]
        %v474 = vld [vmem:[#allocation7 + $0x10] sm:$0xf]
        %v475 = vld [vmem:[#allocation7 + $0x14] sm:$0xf]
        %v476 = vld [vmem:[#allocation7 + $0x18] sm:$0xf]
        %v477 = vld [vmem:[#allocation7 + $0x1c] sm:$0xf]
        %v478 = vld [vmem:[#allocation7 + $0x20] sm:$0xf]
        %v479 = vld [vmem:[#allocation7 + $0x24] sm:$0xf]
        %v480 = vld [vmem:[#allocation7 + $0x28] sm:$0xf]
        %v481 = vld [vmem:[#allocation7 + $0x2c] sm:$0xf]
        %v482 = vld [vmem:[#allocation7 + $0x30] sm:$0xf]
        %v483 = vld [vmem:[#allocation7 + $0x34] sm:$0xf]
        %v484 = vld [vmem:[#allocation7 + $0x38] sm:$0xf]
        %v485 = vld [vmem:[#allocation7 + $0x3c] sm:$0xf]
        %v486 = vld [vmem:[%s6] sm:$0x1]
        %v488 = vlaneseq
        %v489 = vshrl.u32 %v488, 7
        %v490 = vsub.s32 0, %v489
        %v491 = vrot.slane %v486, %v490
        %v509 = vunpack.c.l.b16 %v470
        %v510 = vunpack.c.l.b16 %v471
        %v511 = vunpack.c.l.b16 %v472
        %v512 = vunpack.c.l.b16 %v473
        %v513 = vunpack.c.l.b16 %v474
        %v514 = vunpack.c.l.b16 %v475
        %v515 = vunpack.c.l.b16 %v476
        %v516 = vunpack.c.l.b16 %v477
        %v517 = vunpack.c.l.b16 %v478
        %v518 = vunpack.c.l.b16 %v479
        %v519 = vunpack.c.l.b16 %v480
        %v520 = vunpack.c.l.b16 %v481
        %v521 = vunpack.c.l.b16 %v482
        %v522 = vunpack.c.l.b16 %v483
        %v523 = vunpack.c.l.b16 %v484
        %v524 = vunpack.c.l.b16 %v485
        %v525 = vpack.c.b16 %v510, %v509
        %v526 = vpack.c.b16 %v512, %v511
        %v527 = vpack.c.b16 %v514, %v513
        %v528 = vpack.c.b16 %v516, %v515
        %v529 = vpack.c.b16 %v518, %v517
        %v530 = vpack.c.b16 %v520, %v519
        %v531 = vpack.c.b16 %v522, %v521
        %v532 = vpack.c.b16 %v524, %v523
        %541 = vmatprep.subr.bf16.mxu0 0
        %542 = vmatpush1.bf16.msra.mxu0 %v525
        %543 = vmatprep.subr.bf16.mxu0 0
        %544 = vmatpush1.bf16.msra.mxu0 %v526
        %545 = vmatprep.subr.bf16.mxu0 0
        %546 = vmatpush1.bf16.msra.mxu0 %v527
        %547 = vmatprep.subr.bf16.mxu0 0
        %548 = vmatpush1.bf16.msra.mxu0 %v528
        %549 = vmatprep.subr.bf16.mxu0 0
        %550 = vmatpush1.bf16.msra.mxu0 %v529
        %551 = vmatprep.subr.bf16.mxu0 0
        %552 = vmatpush1.bf16.msra.mxu0 %v530
        %553 = vmatprep.subr.bf16.mxu0 0
        %554 = vmatpush1.bf16.msra.mxu0 %v531
        %555 = vmatprep.subr.bf16.mxu0 0
        %556 = vmatpush1.bf16.msra.mxu0 %v532
        %557 = vmatprep.subr.bf16.mxu0 0
        %558 = vmatpush1.bf16.msra.mxu0 0
        %559 = vmatprep.subr.bf16.mxu0 0
        %560 = vmatpush1.bf16.msra.mxu0 0
        %561 = vmatprep.subr.bf16.mxu0 0
        %562 = vmatpush1.bf16.msra.mxu0 0
        %563 = vmatprep.subr.bf16.mxu0 0
        %564 = vmatpush1.bf16.msra.mxu0 0
        %565 = vmatprep.subr.bf16.mxu0 0
        %566 = vmatpush1.bf16.msra.mxu0 0
        %567 = vmatprep.subr.bf16.mxu0 0
        %568 = vmatpush1.bf16.msra.mxu0 0
        %569 = vmatprep.subr.bf16.mxu0 0
        %570 = vmatpush1.bf16.msra.mxu0 0
        %571 = vmatprep.subr.bf16.mxu0 0
        %572 = vmatpush1.bf16.msra.mxu0 0
        %573 = vmatprep.mubr.bf16.mxu0 0
        %574 = vmatmul.mubr.bf16.gmra.mrb[0].mxu0 %v469
        %v575 = vpop.f32.mrb[0].mxu0
        %v576 = vadd.f32 %v491, %v575
        %v577 = vpop.f32.mrb[0].mxu0
        %v578 = vpop.f32.mrb[0].mxu0
        %v579 = vpop.f32.mrb[0].mxu0
        %580 = vdwg.mxu0
        %581 = vst [vmem:[%s322] sm:$0xff] %v576
        %s582 = sand.u32 %s185, 1
        %s583 = scalar_lea.sflag [#allocation4], %s582
        %s584 = sand.u32 %s185, 1
        %s585 = smul.addr %s584, 8
        %s586 = scalar_lea.vmem [#allocation8], %s585
        // Predicated region
        $region61: #{tpu_custom_call.1} parent=47 // pred_check
          %p587 = pneg %p195
        $region62: #{tpu_custom_call.1} parent=47 // pred_check_branch
          %589 = sbr.rel (%p587) target = $region64
        $region63: #{tpu_custom_call.1} parent=47 // pred_region
          %s591 = ssub.s32 128, 128
          %592 = vsyncadd %s583, %s591
          %s593 = smul.addr %s25, 128
          %s594 = scalar_lea.hbm %s7, %s593
          %s596 = sshll.u32 %s586, 4
          %s597 = int_to_ptr.vmem [resolvable:$true] %s596
          %599 = dma.vmem_to_hbm [thread:$0]  %s597, 128, %s594, %s583
        $region64: #{tpu_custom_call.1} parent=47 // pred_fallthru
          _
      $region48: #{tpu_custom_call.1} parent=5 // pred_fallthru
        _
      %p600 = scmp.le.s32.totalorder 2, %s20
      // Predicated region
      $region65: #{tpu_custom_call.1} parent=5 // pred_check
        %p601 = pneg %p600
      $region66: #{tpu_custom_call.1} parent=5 // pred_check_branch
        %603 = sbr.rel (%p601) target = $region68
      $region67: #{tpu_custom_call.1} parent=5 // pred_region
        %s604 = ssub.s32 %s20, 2
        // Predicated region
        $region69: #{tpu_custom_call.1} parent=67 // pred_check
          %p605 = pneg %p201
        $region70: #{tpu_custom_call.1} parent=67 // pred_check_branch
          %607 = sbr.rel (%p605) target = $region72
        $region71: #{tpu_custom_call.1} parent=67 // pred_region
          %s608 = sand.u32 %s186, 1
          %s609 = scalar_lea.sflag [#allocation4], %s608
          %s610 = sand.u32 %s186, 1
          %s611 = smul.addr %s610, 8
          %s612 = scalar_lea.vmem [#allocation8], %s611
          %613 = dma.done %s609, 128
        $region72: #{tpu_custom_call.1} parent=67 // pred_fallthru
          _
      $region68: #{tpu_custom_call.1} parent=5 // pred_fallthru
        _
    $region6: #{tpu_custom_call.1} parent=1 // loop_footer
      %s24 = sadd.s32 1, %s20
    $region7: #{tpu_custom_call.1} parent=1 // loop_footer_branch
      %19 = sbr.rel target = $region3
    $region8: #{tpu_custom_call.1} parent=1 // loop_exit
      _
    %614 = vsyncpa [#allocation3], 1
    %s615 = scalar_lea.sflag [#allocation3], 1
    %616 = vsyncpa %s615, 1
    %617 = vsyncpa [#allocation6], 1
    %618 = vsyncpa [#allocation4], 1
    %s619 = scalar_lea.sflag [#allocation4], 1
    %620 = vsyncpa %s619, 1

</llo_original>
